<compile_context>
chip_gen: v5e
topology: v5e:2x2
jax: 0.10.0
libtpu: 0.0.40
codegen_flags: <defaults>
</compile_context>

<pallas_src>
import functools

import jax
import jax.numpy as jnp
from jax import lax
from jax.experimental import pallas as pl
from jax.experimental.pallas import tpu as pltpu


def _round_up(x, m):
    return ((x + m - 1) // m) * m


def _num_tensorcores_per_chip():
    """v7x has 2 TensorCores per chip; v5e/v6e (and any fallback) have 1."""
    try:
        kind = jax.devices()[0].device_kind.lower()
    except Exception:
        return 1
    return 2 if "v7" in kind else 1


def _pick_batch_tile(batch, num_cores):
    """Grid-step sizing:
       * 1-TC chips: single grid step (tb = B) -> don't pay per-step overhead twice.
       * 2-TC chips: tb = round_up(ceil(B / cores), 128), clamped to a divisor of B,
         so both cores get equal 'parallel' steps.
    """
    if num_cores <= 1 or batch <= 128:
        return batch
    target = _round_up(pl.cdiv(batch, num_cores), 128)
    if target < batch and batch % target == 0:
        return target
    cand = (min(target, batch) // 128) * 128
    while cand >= 128:
        if batch % cand == 0:
            return cand
        cand -= 128
    # No 128-multiple divides B: fall back to one full-batch tile (one v7x core idles).
    # TODO(synk): pad the batch to a multiple of 256 upstream if this path matters on v7x.
    return batch


def _pick_lane_chunk(tb):
    """Process the batch tile in <=512-lane chunks so live (hidden, chunk) f32
    activations stay well under the 64-vreg register file when tb is the whole batch."""
    if tb <= 512:
        return tb
    cand = 512
    while cand >= 128:
        if tb % cand == 0:
            return cand
        cand -= 128
    return tb


def _mlp_kernel(x_ref, *refs, last_vpu, feature_major_out, chunk):
    """refs = (w0, b0, w1, b1, ..., wL, bL, out_ref).

    Layout inside the kernel (feature-major, batch in lanes):
      x_ref   : (tb, F)          batch-major tile, exactly as stored in HBM
      w_i     : (out_i, in_i)    PyTorch nn.Linear weight layout
      b_i     : (out_i, 1)       broadcasts over lanes (batch)
      last w  : (in_L, 1)        when last_vpu (out_dim == 1): VPU + sublane-reduce path
      last b  : (1, out_dim)     when the output is written batch-major (wide out_dim)
      out_ref : (out_dim, tb)    lane-dense stores; (tb, out_dim) when out_dim >= 128
    """
    out_ref = refs[-1]
    param_refs = refs[:-1]
    n_layers = len(param_refs) // 2
    tb = x_ref.shape[0]
    n_chunks = tb // chunk

    def run_chunk(x):
        # Layer 0: fold the batch->lane transposition into the matmul:
        # (out0, F) contracted with (chunk, F) over F -> (out0, chunk), batch on lanes.
        w0 = param_refs[0][...]
        b0 = param_refs[1][...]
        if x.dtype != w0.dtype:
            x = x.astype(w0.dtype)
        h = lax.dot_general(w0, x, (((1,), (1,)), ((), ())),
                            preferred_element_type=jnp.float32) + b0
        for i in range(1, n_layers):
            h = jnp.maximum(h, 0.0)              # ReLU on the previous hidden layer
            w = param_refs[2 * i][...]
            b = param_refs[2 * i + 1][...]
            if i == n_layers - 1 and last_vpu:
                # Final [in_L] -> 1 layer: VPU multiply + sublane (XLU) reduction,
                # landing directly in the lane-dense (1, chunk) output layout.
                h = jnp.sum(w.astype(jnp.float32) * h, axis=0, keepdims=True) + b
            else:
                hh = h.astype(w.dtype) if h.dtype != w.dtype else h
                if i == n_layers - 1 and not feature_major_out:
                    # Wide output: produce (chunk, out_dim) batch-major (already lane-dense).
                    h = lax.dot_general(hh, w, (((0,), (1,)), ((), ())),
                                        preferred_element_type=jnp.float32) + b
                else:
                    h = lax.dot_general(w, hh, (((1,), (0,)), ((), ())),
                                        preferred_element_type=jnp.float32) + b
        return jax.nn.sigmoid(h)                 # EUP exp path

    # Static, block-aligned chunk slices (offsets are multiples of 128) -> no dynamic
    # lane indexing.  n_chunks == 1 degenerates to a single full-tile pass.
    # TODO(synk): move to an in-kernel pl.loop boundary if bundle dumps show the
    # scheduler keeping all chunks live (ld/st slot saturation from spills).
    for c in range(n_chunks):
        lo = c * chunk
        y = run_chunk(x_ref[lo:lo + chunk, :]).astype(out_ref.dtype)
        if feature_major_out:
            out_ref[:, lo:lo + chunk] = y
        else:
            out_ref[lo:lo + chunk, :] = y


def simple_network_forward(x, params, *, tb=None, compute_dtype=None):
    """x: [B, input_dim]; params: list of (W [out,in], b [out]) in PyTorch nn.Linear layout.

    compute_dtype: optionally cast x/params (e.g. jnp.bfloat16) OUTSIDE the kernel to
    halve HBM traffic and hit native MXU rate; accumulation stays f32 either way.
    Default None keeps f32 end-to-end so the 1e-5 reference tolerance holds.
    """
    B, F = x.shape
    n_layers = len(params)
    out_dim = params[-1][0].shape[0]

    if compute_dtype is not None:
        x = x.astype(compute_dtype)
        params = [(w.astype(compute_dtype), b.astype(compute_dtype)) for w, b in params]

    num_cores = _num_tensorcores_per_chip()
    if tb is None:
        tb = _pick_batch_tile(B, num_cores)
    assert B % tb == 0, (B, tb)
    grid = (B // tb,)
    chunk = _pick_lane_chunk(tb)

    # Output layout: feature-major (out_dim, B) lane-dense stores while out_dim is tiny
    # (the wrapper-side .T is then a free reshape); batch-major once out_dim >= 128.
    last_vpu = (out_dim == 1 and n_layers > 1)
    feature_major_out = (out_dim < 128) or (n_layers == 1)

    # Weights/biases use constant index_maps -> VMEM-resident across grid steps.
    # Once they grow past a few MiB, single-buffer them (no point double-buffering a
    # resident operand on v7x's 64 MiB VMEM).
    raw_param_bytes = sum(w.size * w.dtype.itemsize + b.size * b.dtype.itemsize
                          for w, b in params)
    param_pipeline = pl.Buffered(1) if raw_param_bytes > (4 << 20) else None

    flat_params = []
    in_specs = [pl.BlockSpec((tb, F), lambda i: (i, 0))]
    padded_param_bytes = 0
    for idx, (w, b) in enumerate(params):
        o_dim = w.shape[0]
        if idx == n_layers - 1 and last_vpu:
            kw = w.T                       # (in_L, 1): lane-broadcast form
            kb = b.reshape(o_dim, 1)
        elif idx == n_layers - 1 and not feature_major_out:
            kw = w                         # (out, in)
            kb = b.reshape(1, o_dim)       # broadcasts over sublanes (batch-major out)
        else:
            kw = w                         # (out, in): PyTorch layout
            kb = b.reshape(o_dim, 1)       # broadcasts over lanes (batch)
        flat_params.extend([kw, kb])
        for arr in (kw, kb):
            padded_param_bytes += (_round_up(arr.shape[0], 8) *
                                   _round_up(arr.shape[1], 128) * arr.dtype.itemsize)
            if param_pipeline is None:
                in_specs.append(pl.BlockSpec(arr.shape, lambda i: (0, 0)))
            else:
                in_specs.append(pl.BlockSpec(arr.shape, lambda i: (0, 0),
                                             pipeline_mode=param_pipeline))

    if feature_major_out:
        out_shape = jax.ShapeDtypeStruct((out_dim, B), x.dtype)
        out_spec = pl.BlockSpec((out_dim, tb), lambda i: (0, i))
    else:
        out_shape = jax.ShapeDtypeStruct((B, out_dim), x.dtype)
        out_spec = pl.BlockSpec((tb, out_dim), lambda i: (i, 0))

    # Advisory cost estimate so XLA can schedule/overlap this tiny call in a bigger graph.
    dims = [F] + [w.shape[0] for w, _ in params]
    flops = 2 * B * sum(a * b for a, b in zip(dims[:-1], dims[1:]))
    bytes_accessed = (x.size * x.dtype.itemsize
                      + B * out_dim * x.dtype.itemsize
                      + raw_param_bytes)
    cost = pl.CostEstimate(flops=int(flops), transcendentals=int(B * out_dim),
                           bytes_accessed=int(bytes_accessed))

    # Mechanical VMEM budget: lane-padded, double-buffered x/out tiles + resident params
    # + live activations.  Raise the scoped limit only when the estimate needs it.
    itemsize = x.dtype.itemsize
    vmem_est = 2 * _round_up(tb, 8) * _round_up(F, 128) * itemsize            # x tile x2
    if feature_major_out:
        vmem_est += 2 * _round_up(out_dim, 8) * _round_up(tb, 128) * itemsize
    else:
        vmem_est += 2 * _round_up(tb, 8) * _round_up(out_dim, 128) * itemsize
    vmem_est += (1 if param_pipeline is not None else 2) * padded_param_bytes
    vmem_est += 2 * _round_up(max(dims), 8) * _round_up(chunk, 128) * 4       # activations
    compiler_kwargs = dict(dimension_semantics=("parallel",))
    if vmem_est > (24 << 20):
        compiler_kwargs["vmem_limit_bytes"] = min(int(vmem_est * 2), 100 << 20)

    out = pl.pallas_call(
        functools.partial(_mlp_kernel, last_vpu=last_vpu,
                          feature_major_out=feature_major_out, chunk=chunk),
        out_shape=out_shape,
        grid=grid,
        in_specs=in_specs,
        out_specs=out_spec,
        compiler_params=pltpu.CompilerParams(**compiler_kwargs),
        cost_estimate=cost,
    )(x, *flat_params)

    return out.T if feature_major_out else out  # back to [B, out_dim]


def init_params(key, input_dim, structure, output_dim, dtype=jnp.float32):
    """PyTorch-layout params: W [out,in], b [out], U(-1/sqrt(fan_in), +) init."""
    dims = [input_dim] + list(structure) + [output_dim]
    params = []
    for fan_in, fan_out in zip(dims[:-1], dims[1:]):
        key, kw, kb = jax.random.split(key, 3)
        bound = 1.0 / (fan_in ** 0.5)
        w = jax.random.uniform(kw, (fan_out, fan_in), dtype, -bound, bound)
        b = jax.random.uniform(kb, (fan_out,), dtype, -bound, bound)
        params.append((w, b))
    return params


def reference_forward(x, params):
    h = x.astype(jnp.float32)
    for i, (w, b) in enumerate(params):
        h = jnp.dot(h, w.T, precision=jax.lax.Precision.HIGHEST) + b
        h = jnp.maximum(h, 0.0) if i < len(params) - 1 else jax.nn.sigmoid(h)
    return h.astype(x.dtype)


if __name__ == "__main__":
    # Higgs-style config: 28 input features, hidden [64, 32], single sigmoid output.
    # batch=1024 -> single grid step on v5e/v6e (2 in-kernel 512-lane chunks),
    # two 512-row parallel steps on v7x.
    input_dim = 28
    structure = [64, 32]
    output_dim = 1
    batch = 1024

    key = jax.random.PRNGKey(0)
    key, kx = jax.random.split(key)
    x = jax.random.normal(kx, (batch, input_dim), dtype=jnp.float32)
    params = init_params(key, input_dim, structure, output_dim)

    fwd = jax.jit(simple_network_forward)
    out = jax.block_until_ready(fwd(x, params))

    ref = reference_forward(x, params)
    assert out.shape == (batch, output_dim), out.shape
    assert jnp.allclose(out, ref, atol=1e-5, rtol=1e-5), "mismatch vs reference"

    print("KERNEL_OK")
</pallas_src>

<mosaic_0001>
module attributes {stable_mosaic.version = 11 : i64} {
  func.func @_mlp_kernel(%arg0: i32, %arg1: memref<1024x28xf32, #tpu.memory_space<vmem>>, %arg2: memref<64x28xf32, #tpu.memory_space<vmem>>, %arg3: memref<64x1xf32, #tpu.memory_space<vmem>>, %arg4: memref<32x64xf32, #tpu.memory_space<vmem>>, %arg5: memref<32x1xf32, #tpu.memory_space<vmem>>, %arg6: memref<32x1xf32, #tpu.memory_space<vmem>>, %arg7: memref<1x1xf32, #tpu.memory_space<vmem>>, %arg8: memref<1x1024xf32, #tpu.memory_space<vmem>>) attributes {dimension_semantics = [#tpu.dimension_semantics<parallel>], iteration_bounds = array<i64: 1>, scalar_prefetch = 0 : i64, scratch_operands = 0 : i64, tpu.core_type = #tpu.core_type<tc>, window_params = [{transform_indices = @transform_0, window_bounds = array<i64: 1024, 28>}, {pipeline_mode = #tpu.pipeline_mode<synchronous>, transform_indices = @transform_1, window_bounds = array<i64: 64, 28>}, {pipeline_mode = #tpu.pipeline_mode<synchronous>, transform_indices = @transform_2, window_bounds = array<i64: 64, 1>}, {pipeline_mode = #tpu.pipeline_mode<synchronous>, transform_indices = @transform_3, window_bounds = array<i64: 32, 64>}, {pipeline_mode = #tpu.pipeline_mode<synchronous>, transform_indices = @transform_4, window_bounds = array<i64: 32, 1>}, {pipeline_mode = #tpu.pipeline_mode<synchronous>, transform_indices = @transform_5, window_bounds = array<i64: 32, 1>}, {pipeline_mode = #tpu.pipeline_mode<synchronous>, transform_indices = @transform_6, window_bounds = array<i64: 1, 1>}, {transform_indices = @transform_7, window_bounds = array<i64: 1, 1024>}]} {
    %c0 = arith.constant 0 : index
    %c0_0 = arith.constant 0 : index
    %0 = vector.load %arg1[%c0, %c0_0] : memref<1024x28xf32, #tpu.memory_space<vmem>>, vector<512x28xf32>
    %c0_1 = arith.constant 0 : index
    %c0_2 = arith.constant 0 : index
    %1 = vector.load %arg2[%c0_1, %c0_2] : memref<64x28xf32, #tpu.memory_space<vmem>>, vector<64x28xf32>
    %c0_3 = arith.constant 0 : index
    %c0_4 = arith.constant 0 : index
    %2 = vector.load %arg3[%c0_3, %c0_4] : memref<64x1xf32, #tpu.memory_space<vmem>>, vector<64x1xf32>
    %cst = arith.constant dense<0.000000e+00> : vector<64x512xf32>
    %3 = tpu.matmul %1, %0, %cst {dimension_numbers = #tpu.dot_dimension_numbers<[1], [1], [0], [0], [0, 0, 1, 0], [], []>} : vector<64x28xf32>, vector<512x28xf32>, vector<64x512xf32> -> vector<64x512xf32>
    %4 = vector.broadcast %2 : vector<64x1xf32> to vector<64x512xf32>
    %5 = arith.addf %3, %4 : vector<64x512xf32>
    %cst_5 = arith.constant 0.000000e+00 : f32
    %6 = vector.broadcast %cst_5 : f32 to vector<64x512xf32>
    %7 = arith.maximumf %5, %6 : vector<64x512xf32>
    %c0_6 = arith.constant 0 : index
    %c0_7 = arith.constant 0 : index
    %8 = vector.load %arg4[%c0_6, %c0_7] : memref<32x64xf32, #tpu.memory_space<vmem>>, vector<32x64xf32>
    %c0_8 = arith.constant 0 : index
    %c0_9 = arith.constant 0 : index
    %9 = vector.load %arg5[%c0_8, %c0_9] : memref<32x1xf32, #tpu.memory_space<vmem>>, vector<32x1xf32>
    %cst_10 = arith.constant dense<0.000000e+00> : vector<32x512xf32>
    %10 = tpu.matmul %8, %7, %cst_10 {dimension_numbers = #tpu.dot_dimension_numbers<[1], [0], [0], [1], [0, 0, 1, 1], [], []>} : vector<32x64xf32>, vector<64x512xf32>, vector<32x512xf32> -> vector<32x512xf32>
    %11 = vector.broadcast %9 : vector<32x1xf32> to vector<32x512xf32>
    %12 = arith.addf %10, %11 : vector<32x512xf32>
    %cst_11 = arith.constant 0.000000e+00 : f32
    %13 = vector.broadcast %cst_11 : f32 to vector<32x512xf32>
    %14 = arith.maximumf %12, %13 : vector<32x512xf32>
    %c0_12 = arith.constant 0 : index
    %c0_13 = arith.constant 0 : index
    %15 = vector.load %arg6[%c0_12, %c0_13] : memref<32x1xf32, #tpu.memory_space<vmem>>, vector<32x1xf32>
    %c0_14 = arith.constant 0 : index
    %c0_15 = arith.constant 0 : index
    %16 = vector.load %arg7[%c0_14, %c0_15] : memref<1x1xf32, #tpu.memory_space<vmem>>, vector<1x1xf32>
    %17 = vector.broadcast %15 : vector<32x1xf32> to vector<32x512xf32>
    %18 = arith.mulf %17, %14 : vector<32x512xf32>
    %cst_16 = arith.constant dense<0.000000e+00> : vector<512xf32>
    %19 = vector.multi_reduction <add>, %18, %cst_16 [0] : vector<32x512xf32> to vector<512xf32>
    %20 = vector.shape_cast %19 : vector<512xf32> to vector<1x512xf32>
    %21 = vector.broadcast %16 : vector<1x1xf32> to vector<1x512xf32>
    %22 = arith.addf %20, %21 : vector<1x512xf32>
    %23 = arith.negf %22 : vector<1x512xf32>
    %24 = math.exp %23 : vector<1x512xf32>
    %cst_17 = arith.constant 1.000000e+00 : f32
    %25 = vector.broadcast %cst_17 : f32 to vector<1x512xf32>
    %26 = arith.addf %25, %24 : vector<1x512xf32>
    %27 = arith.divf %25, %26 : vector<1x512xf32>
    %c0_18 = arith.constant 0 : index
    %c0_19 = arith.constant 0 : index
    %28 = vector.load %arg8[%c0_18, %c0_19] : memref<1x1024xf32, #tpu.memory_space<vmem>>, vector<1x512xf32>
    tpu.vector_store %arg8[%c0_18, %c0_19], %27 {strides = array<i32>} : memref<1x1024xf32, #tpu.memory_space<vmem>>, vector<1x512xf32>,
    %c512 = arith.constant 512 : index
    %c0_20 = arith.constant 0 : index
    %29 = vector.load %arg1[%c512, %c0_20] : memref<1024x28xf32, #tpu.memory_space<vmem>>, vector<512x28xf32>
    %c0_21 = arith.constant 0 : index
    %c0_22 = arith.constant 0 : index
    %30 = vector.load %arg2[%c0_21, %c0_22] : memref<64x28xf32, #tpu.memory_space<vmem>>, vector<64x28xf32>
    %c0_23 = arith.constant 0 : index
    %c0_24 = arith.constant 0 : index
    %31 = vector.load %arg3[%c0_23, %c0_24] : memref<64x1xf32, #tpu.memory_space<vmem>>, vector<64x1xf32>
    %cst_25 = arith.constant dense<0.000000e+00> : vector<64x512xf32>
    %32 = tpu.matmul %30, %29, %cst_25 {dimension_numbers = #tpu.dot_dimension_numbers<[1], [1], [0], [0], [0, 0, 1, 0], [], []>} : vector<64x28xf32>, vector<512x28xf32>, vector<64x512xf32> -> vector<64x512xf32>
    %33 = vector.broadcast %31 : vector<64x1xf32> to vector<64x512xf32>
    %34 = arith.addf %32, %33 : vector<64x512xf32>
    %cst_26 = arith.constant 0.000000e+00 : f32
    %35 = vector.broadcast %cst_26 : f32 to vector<64x512xf32>
    %36 = arith.maximumf %34, %35 : vector<64x512xf32>
    %c0_27 = arith.constant 0 : index
    %c0_28 = arith.constant 0 : index
    %37 = vector.load %arg4[%c0_27, %c0_28] : memref<32x64xf32, #tpu.memory_space<vmem>>, vector<32x64xf32>
    %c0_29 = arith.constant 0 : index
    %c0_30 = arith.constant 0 : index
    %38 = vector.load %arg5[%c0_29, %c0_30] : memref<32x1xf32, #tpu.memory_space<vmem>>, vector<32x1xf32>
    %cst_31 = arith.constant dense<0.000000e+00> : vector<32x512xf32>
    %39 = tpu.matmul %37, %36, %cst_31 {dimension_numbers = #tpu.dot_dimension_numbers<[1], [0], [0], [1], [0, 0, 1, 1], [], []>} : vector<32x64xf32>, vector<64x512xf32>, vector<32x512xf32> -> vector<32x512xf32>
    %40 = vector.broadcast %38 : vector<32x1xf32> to vector<32x512xf32>
    %41 = arith.addf %39, %40 : vector<32x512xf32>
    %cst_32 = arith.constant 0.000000e+00 : f32
    %42 = vector.broadcast %cst_32 : f32 to vector<32x512xf32>
    %43 = arith.maximumf %41, %42 : vector<32x512xf32>
    %c0_33 = arith.constant 0 : index
    %c0_34 = arith.constant 0 : index
    %44 = vector.load %arg6[%c0_33, %c0_34] : memref<32x1xf32, #tpu.memory_space<vmem>>, vector<32x1xf32>
    %c0_35 = arith.constant 0 : index
    %c0_36 = arith.constant 0 : index
    %45 = vector.load %arg7[%c0_35, %c0_36] : memref<1x1xf32, #tpu.memory_space<vmem>>, vector<1x1xf32>
    %46 = vector.broadcast %44 : vector<32x1xf32> to vector<32x512xf32>
    %47 = arith.mulf %46, %43 : vector<32x512xf32>
    %cst_37 = arith.constant dense<0.000000e+00> : vector<512xf32>
    %48 = vector.multi_reduction <add>, %47, %cst_37 [0] : vector<32x512xf32> to vector<512xf32>
    %49 = vector.shape_cast %48 : vector<512xf32> to vector<1x512xf32>
    %50 = vector.broadcast %45 : vector<1x1xf32> to vector<1x512xf32>
    %51 = arith.addf %49, %50 : vector<1x512xf32>
    %52 = arith.negf %51 : vector<1x512xf32>
    %53 = math.exp %52 : vector<1x512xf32>
    %cst_38 = arith.constant 1.000000e+00 : f32
    %54 = vector.broadcast %cst_38 : f32 to vector<1x512xf32>
    %55 = arith.addf %54, %53 : vector<1x512xf32>
    %56 = arith.divf %54, %55 : vector<1x512xf32>
    %c0_39 = arith.constant 0 : index
    %c512_40 = arith.constant 512 : index
    %57 = vector.load %arg8[%c0_39, %c512_40] : memref<1x1024xf32, #tpu.memory_space<vmem>>, vector<1x512xf32>
    tpu.vector_store %arg8[%c0_39, %c512_40], %56 {strides = array<i32>} : memref<1x1024xf32, #tpu.memory_space<vmem>>, vector<1x512xf32>,
    return
  }
  func.func @transform_0(%arg0: i32) -> (i32, i32) {
    %c0_i32 = arith.constant 0 : i32
    %c0_i32_0 = arith.constant 0 : i32
    return %arg0, %c0_i32 : i32, i32
  }
  func.func @transform_1(%arg0: i32) -> (i32, i32) {
    %c0_i32 = arith.constant 0 : i32
    %c0_i32_0 = arith.constant 0 : i32
    %c0_i32_1 = arith.constant 0 : i32
    return %c0_i32, %c0_i32_0 : i32, i32
  }
  func.func @transform_2(%arg0: i32) -> (i32, i32) {
    %c0_i32 = arith.constant 0 : i32
    %c0_i32_0 = arith.constant 0 : i32
    %c0_i32_1 = arith.constant 0 : i32
    return %c0_i32, %c0_i32_0 : i32, i32
  }
  func.func @transform_3(%arg0: i32) -> (i32, i32) {
    %c0_i32 = arith.constant 0 : i32
    %c0_i32_0 = arith.constant 0 : i32
    %c0_i32_1 = arith.constant 0 : i32
    return %c0_i32, %c0_i32_0 : i32, i32
  }
  func.func @transform_4(%arg0: i32) -> (i32, i32) {
    %c0_i32 = arith.constant 0 : i32
    %c0_i32_0 = arith.constant 0 : i32
    %c0_i32_1 = arith.constant 0 : i32
    return %c0_i32, %c0_i32_0 : i32, i32
  }
  func.func @transform_5(%arg0: i32) -> (i32, i32) {
    %c0_i32 = arith.constant 0 : i32
    %c0_i32_0 = arith.constant 0 : i32
    %c0_i32_1 = arith.constant 0 : i32
    return %c0_i32, %c0_i32_0 : i32, i32
  }
  func.func @transform_6(%arg0: i32) -> (i32, i32) {
    %c0_i32 = arith.constant 0 : i32
    %c0_i32_0 = arith.constant 0 : i32
    %c0_i32_1 = arith.constant 0 : i32
    return %c0_i32, %c0_i32_0 : i32, i32
  }
  func.func @transform_7(%arg0: i32) -> (i32, i32) {
    %c0_i32 = arith.constant 0 : i32
    %c0_i32_0 = arith.constant 0 : i32
    return %c0_i32, %arg0 : i32, i32
  }
}

</mosaic_0001>

<llo_original>
// kernel: simple_network_forward.1
$region0: #{simple_network_forward.1}
  #allocation0 [shape = 'u32[]', space=smem, size = 0x4, offset = 0x4, fixed_abs, tag = 'smem constant byte address 0x4 - core index']
  #allocation1 [shape = 'u32[72,128]{1,0:T(1,128)}', space=vmem, size = 0x9000, scoped, tag = 'internal scratch']
  #allocation2 [shape = 'f32[1,1]{1,0:T(1,128)S(1)}', space=vmem, size = 0x200, scoped, tag = 'scoped memory for simple_network_forward.1']
  %s0 = inlined_call_operand.vmem [shape: f32[1024,28], index: 0, kind: input, shape index: {}]
  %s1 = inlined_call_operand.vmem [shape: f32[64,28], index: 1, kind: input, shape index: {}]
  %s2 = inlined_call_operand.vmem [shape: f32[64,1], index: 2, kind: input, shape index: {}]
  %s3 = inlined_call_operand.vmem [shape: f32[32,64], index: 3, kind: input, shape index: {}]
  %s4 = inlined_call_operand.vmem [shape: f32[32,1], index: 4, kind: input, shape index: {}]
  %s5 = inlined_call_operand.vmem [shape: f32[32,1], index: 5, kind: input, shape index: {}]
  %s6 = inlined_call_operand.<no memory space> [shape: f32[1,1], index: 6, kind: input, shape index: {}]
  %s7 = inlined_call_operand.hbm [shape: f32[1,1024], index: 7, kind: output, shape index: {}]
  %s8 = sld [smem:[#allocation0]]
  $region38: #{simple_network_forward.1} parent=0
    _
  %s10 = ssub.s32 1, %s8
  %s11 = scalar_select 0, %s10, %s8
  %v12 = vstv %s6
  %13 = vst [vmem:[#allocation2] sm:$0x1] %v12
  $region1: #{simple_network_forward.1} parent=0
    #allocation3 [shape = 'u8[4096]{0}', space=vmem, size = 0x1000, scoped, tag = 'output window, operand 0, single buffered']
    #allocation4 [shape = 's32[1]{0}', space=sflag, size = 0x4, scoped, tag = 'scoped memory for simple_network_forward.1']
    %14 = vsyncpa [#allocation4], 0
    // Predicated region
    $region2: #{simple_network_forward.1} parent=1 // pred_check
      _
    $region3: #{simple_network_forward.1} parent=1 // pred_check_branch
      %16 = sbr.rel (0) target = $region5
    $region4: #{simple_network_forward.1} parent=1 // pred_region
      _
    $region5: #{simple_network_forward.1} parent=1 // pred_fallthru
      _
    // Predicated region
    $region6: #{simple_network_forward.1} parent=1 // pred_check
      _
    $region7: #{simple_network_forward.1} parent=1 // pred_check_branch
      %18 = sbr.rel (0) target = $region9
    $region8: #{simple_network_forward.1} parent=1 // pred_region
      _
    $region9: #{simple_network_forward.1} parent=1 // pred_fallthru
      _
    // Predicated region
    $region10: #{simple_network_forward.1} parent=1 // pred_check
      _
    $region11: #{simple_network_forward.1} parent=1 // pred_check_branch
      %20 = sbr.rel (0) target = $region13
    $region12: #{simple_network_forward.1} parent=1 // pred_region
      _
    $region13: #{simple_network_forward.1} parent=1 // pred_fallthru
      _
    // Predicated region
    $region14: #{simple_network_forward.1} parent=1 // pred_check
      _
    $region15: #{simple_network_forward.1} parent=1 // pred_check_branch
      %22 = sbr.rel (0) target = $region17
    $region16: #{simple_network_forward.1} parent=1 // pred_region
      _
    $region17: #{simple_network_forward.1} parent=1 // pred_fallthru
      _
    // Predicated region
    $region18: #{simple_network_forward.1} parent=1 // pred_check
      _
    $region19: #{simple_network_forward.1} parent=1 // pred_check_branch
      %24 = sbr.rel (0) target = $region21
    $region20: #{simple_network_forward.1} parent=1 // pred_region
      _
    $region21: #{simple_network_forward.1} parent=1 // pred_fallthru
      _
    // Predicated region
    $region22: #{simple_network_forward.1} parent=1 // pred_check
      _
    $region23: #{simple_network_forward.1} parent=1 // pred_check_branch
      %26 = sbr.rel (0) target = $region25
    $region24: #{simple_network_forward.1} parent=1 // pred_region
      _
    $region25: #{simple_network_forward.1} parent=1 // pred_fallthru
      _
    // Predicated region
    $region26: #{simple_network_forward.1} parent=1 // pred_check
      _
    $region27: #{simple_network_forward.1} parent=1 // pred_check_branch
      %28 = sbr.rel (0) target = $region29
    $region28: #{simple_network_forward.1} parent=1 // pred_region
      _
    $region29: #{simple_network_forward.1} parent=1 // pred_fallthru
      _
    %v29 = vld [vmem:[%s0] sm:$0xff]
    %v30 = vld [vmem:[%s0 + $0x8] sm:$0xff]
    %v31 = vld [vmem:[%s0 + $0x10] sm:$0xff]
    %v32 = vld [vmem:[%s0 + $0x18] sm:$0xff]
    %v33 = vld [vmem:[%s0 + $0x20] sm:$0xff]
    %v34 = vld [vmem:[%s0 + $0x28] sm:$0xff]
    %v35 = vld [vmem:[%s0 + $0x30] sm:$0xff]
    %v36 = vld [vmem:[%s0 + $0x38] sm:$0xff]
    %v37 = vld [vmem:[%s0 + $0x40] sm:$0xff]
    %v38 = vld [vmem:[%s0 + $0x48] sm:$0xff]
    %v39 = vld [vmem:[%s0 + $0x50] sm:$0xff]
    %v40 = vld [vmem:[%s0 + $0x58] sm:$0xff]
    %v41 = vld [vmem:[%s0 + $0x60] sm:$0xff]
    %v42 = vld [vmem:[%s0 + $0x68] sm:$0xff]
    %v43 = vld [vmem:[%s0 + $0x70] sm:$0xff]
    %v44 = vld [vmem:[%s0 + $0x78] sm:$0xff]
    %v45 = vld [vmem:[%s0 + $0x80] sm:$0xff]
    %v46 = vld [vmem:[%s0 + $0x88] sm:$0xff]
    %v47 = vld [vmem:[%s0 + $0x90] sm:$0xff]
    %v48 = vld [vmem:[%s0 + $0x98] sm:$0xff]
    %v49 = vld [vmem:[%s0 + $0xa0] sm:$0xff]
    %v50 = vld [vmem:[%s0 + $0xa8] sm:$0xff]
    %v51 = vld [vmem:[%s0 + $0xb0] sm:$0xff]
    %v52 = vld [vmem:[%s0 + $0xb8] sm:$0xff]
    %v53 = vld [vmem:[%s0 + $0xc0] sm:$0xff]
    %v54 = vld [vmem:[%s0 + $0xc8] sm:$0xff]
    %v55 = vld [vmem:[%s0 + $0xd0] sm:$0xff]
    %v56 = vld [vmem:[%s0 + $0xd8] sm:$0xff]
    %v57 = vld [vmem:[%s0 + $0xe0] sm:$0xff]
    %v58 = vld [vmem:[%s0 + $0xe8] sm:$0xff]
    %v59 = vld [vmem:[%s0 + $0xf0] sm:$0xff]
    %v60 = vld [vmem:[%s0 + $0xf8] sm:$0xff]
    %v61 = vld [vmem:[%s0 + $0x100] sm:$0xff]
    %v62 = vld [vmem:[%s0 + $0x108] sm:$0xff]
    %v63 = vld [vmem:[%s0 + $0x110] sm:$0xff]
    %v64 = vld [vmem:[%s0 + $0x118] sm:$0xff]
    %v65 = vld [vmem:[%s0 + $0x120] sm:$0xff]
    %v66 = vld [vmem:[%s0 + $0x128] sm:$0xff]
    %v67 = vld [vmem:[%s0 + $0x130] sm:$0xff]
    %v68 = vld [vmem:[%s0 + $0x138] sm:$0xff]
    %v69 = vld [vmem:[%s0 + $0x140] sm:$0xff]
    %v70 = vld [vmem:[%s0 + $0x148] sm:$0xff]
    %v71 = vld [vmem:[%s0 + $0x150] sm:$0xff]
    %v72 = vld [vmem:[%s0 + $0x158] sm:$0xff]
    %v73 = vld [vmem:[%s0 + $0x160] sm:$0xff]
    %v74 = vld [vmem:[%s0 + $0x168] sm:$0xff]
    %v75 = vld [vmem:[%s0 + $0x170] sm:$0xff]
    %v76 = vld [vmem:[%s0 + $0x178] sm:$0xff]
    %v77 = vld [vmem:[%s0 + $0x180] sm:$0xff]
    %v78 = vld [vmem:[%s0 + $0x188] sm:$0xff]
    %v79 = vld [vmem:[%s0 + $0x190] sm:$0xff]
    %v80 = vld [vmem:[%s0 + $0x198] sm:$0xff]
    %v81 = vld [vmem:[%s0 + $0x1a0] sm:$0xff]
    %v82 = vld [vmem:[%s0 + $0x1a8] sm:$0xff]
    %v83 = vld [vmem:[%s0 + $0x1b0] sm:$0xff]
    %v84 = vld [vmem:[%s0 + $0x1b8] sm:$0xff]
    %v85 = vld [vmem:[%s0 + $0x1c0] sm:$0xff]
    %v86 = vld [vmem:[%s0 + $0x1c8] sm:$0xff]
    %v87 = vld [vmem:[%s0 + $0x1d0] sm:$0xff]
    %v88 = vld [vmem:[%s0 + $0x1d8] sm:$0xff]
    %v89 = vld [vmem:[%s0 + $0x1e0] sm:$0xff]
    %v90 = vld [vmem:[%s0 + $0x1e8] sm:$0xff]
    %v91 = vld [vmem:[%s0 + $0x1f0] sm:$0xff]
    %v92 = vld [vmem:[%s0 + $0x1f8] sm:$0xff]
    %v93 = vld [vmem:[%s1] sm:$0xff]
    %v94 = vld [vmem:[%s1 + $0x8] sm:$0xff]
    %v95 = vld [vmem:[%s1 + $0x10] sm:$0xff]
    %v96 = vld [vmem:[%s1 + $0x18] sm:$0xff]
    %v97 = vld [vmem:[%s1 + $0x20] sm:$0xff]
    %v98 = vld [vmem:[%s1 + $0x28] sm:$0xff]
    %v99 = vld [vmem:[%s1 + $0x30] sm:$0xff]
    %v100 = vld [vmem:[%s1 + $0x38] sm:$0xff]
    %v101 = vld [vmem:[%s2] sm:$0xff]
    %v102 = vld [vmem:[%s2 + $0x8] sm:$0xff]
    %v103 = vld [vmem:[%s2 + $0x10] sm:$0xff]
    %v104 = vld [vmem:[%s2 + $0x18] sm:$0xff]
    %v105 = vld [vmem:[%s2 + $0x20] sm:$0xff]
    %v106 = vld [vmem:[%s2 + $0x28] sm:$0xff]
    %v107 = vld [vmem:[%s2 + $0x30] sm:$0xff]
    %v108 = vld [vmem:[%s2 + $0x38] sm:$0xff]
    %110 = vset.pattern.permute.xlu0 0
    %111 = vperm.xlu0 %110, %v101
    %v112 = vpop.permute.xlu0 %111
    %115 = vset.pattern.permute.xlu0 0
    %116 = vperm.xlu0 %115, %v102
    %v117 = vpop.permute.xlu0 %116
    %120 = vset.pattern.permute.xlu0 0
    %121 = vperm.xlu0 %120, %v103
    %v122 = vpop.permute.xlu0 %121
    %125 = vset.pattern.permute.xlu0 0
    %126 = vperm.xlu0 %125, %v104
    %v127 = vpop.permute.xlu0 %126
    %130 = vset.pattern.permute.xlu0 0
    %131 = vperm.xlu0 %130, %v105
    %v132 = vpop.permute.xlu0 %131
    %135 = vset.pattern.permute.xlu0 0
    %136 = vperm.xlu0 %135, %v106
    %v137 = vpop.permute.xlu0 %136
    %140 = vset.pattern.permute.xlu0 0
    %141 = vperm.xlu0 %140, %v107
    %v142 = vpop.permute.xlu0 %141
    %145 = vset.pattern.permute.xlu0 0
    %146 = vperm.xlu0 %145, %v108
    %v147 = vpop.permute.xlu0 %146
    %vm149 = vcmask 228352
    %v151 = vsel %vm149, %v93, 0
    %v154 = vsel %vm149, %v94, 0
    %v157 = vsel %vm149, %v95, 0
    %v160 = vsel %vm149, %v96, 0
    %v163 = vsel %vm149, %v97, 0
    %v166 = vsel %vm149, %v98, 0
    %v169 = vsel %vm149, %v99, 0
    %v172 = vsel %vm149, %v100, 0
    %v175 = vsel %vm149, %v29, 0
    %v178 = vsel %vm149, %v30, 0
    %v181 = vsel %vm149, %v31, 0
    %v184 = vsel %vm149, %v32, 0
    %v187 = vsel %vm149, %v33, 0
    %v190 = vsel %vm149, %v34, 0
    %v193 = vsel %vm149, %v35, 0
    %v196 = vsel %vm149, %v36, 0
    %v199 = vsel %vm149, %v37, 0
    %v202 = vsel %vm149, %v38, 0
    %v205 = vsel %vm149, %v39, 0
    %v208 = vsel %vm149, %v40, 0
    %v211 = vsel %vm149, %v41, 0
    %v214 = vsel %vm149, %v42, 0
    %v217 = vsel %vm149, %v43, 0
    %v220 = vsel %vm149, %v44, 0
    %v223 = vsel %vm149, %v45, 0
    %v226 = vsel %vm149, %v46, 0
    %v229 = vsel %vm149, %v47, 0
    %v232 = vsel %vm149, %v48, 0
    %v235 = vsel %vm149, %v49, 0
    %v238 = vsel %vm149, %v50, 0
    %v241 = vsel %vm149, %v51, 0
    %v244 = vsel %vm149, %v52, 0
    %v247 = vsel %vm149, %v53, 0
    %v250 = vsel %vm149, %v54, 0
    %v253 = vsel %vm149, %v55, 0
    %v256 = vsel %vm149, %v56, 0
    %v259 = vsel %vm149, %v57, 0
    %v262 = vsel %vm149, %v58, 0
    %v265 = vsel %vm149, %v59, 0
    %v268 = vsel %vm149, %v60, 0
    %v271 = vsel %vm149, %v61, 0
    %v274 = vsel %vm149, %v62, 0
    %v277 = vsel %vm149, %v63, 0
    %v280 = vsel %vm149, %v64, 0
    %v283 = vsel %vm149, %v65, 0
    %v286 = vsel %vm149, %v66, 0
    %v289 = vsel %vm149, %v67, 0
    %v292 = vsel %vm149, %v68, 0
    %v295 = vsel %vm149, %v69, 0
    %v298 = vsel %vm149, %v70, 0
    %v301 = vsel %vm149, %v71, 0
    %v304 = vsel %vm149, %v72, 0
    %v307 = vsel %vm149, %v73, 0
    %v310 = vsel %vm149, %v74, 0
    %v313 = vsel %vm149, %v75, 0
    %v316 = vsel %vm149, %v76, 0
    %v319 = vsel %vm149, %v77, 0
    %v322 = vsel %vm149, %v78, 0
    %v325 = vsel %vm149, %v79, 0
    %v328 = vsel %vm149, %v80, 0
    %v331 = vsel %vm149, %v81, 0
    %v334 = vsel %vm149, %v82, 0
    %v337 = vsel %vm149, %v83, 0
    %v340 = vsel %vm149, %v84, 0
    %v343 = vsel %vm149, %v85, 0
    %v346 = vsel %vm149, %v86, 0
    %v349 = vsel %vm149, %v87, 0
    %v352 = vsel %vm149, %v88, 0
    %v355 = vsel %vm149, %v89, 0
    %v358 = vsel %vm149, %v90, 0
    %v361 = vsel %vm149, %v91, 0
    %v364 = vsel %vm149, %v92, 0
    %366 = vmatpush.xpose.msra.mxu0 %v220
    %367 = vmatpush.xpose.msra.mxu0 %v217
    %368 = vmatpush.xpose.msra.mxu0 %v214
    %369 = vmatpush.xpose.msra.mxu0 %v211
    %370 = vmatpush.xpose.msra.mxu0 %v208
    %371 = vmatpush.xpose.msra.mxu0 %v205
    %372 = vmatpush.xpose.msra.mxu0 %v202
    %373 = vmatpush.xpose.msra.mxu0 %v199
    %374 = vmatpush.xpose.msra.mxu0 %v196
    %375 = vmatpush.xpose.msra.mxu0 %v193
    %376 = vmatpush.xpose.msra.mxu0 %v190
    %377 = vmatpush.xpose.msra.mxu0 %v187
    %378 = vmatpush.xpose.msra.mxu0 %v184
    %379 = vmatpush.xpose.msra.mxu0 %v181
    %380 = vmatpush.xpose.msra.mxu0 %v178
    %381 = vmatpush.xpose.msra.mxu0 %v175
    %382 = vmatmul.f32.gmra.mxu0 %v151
    %v383 = vpop.f32.mrf.mxu0
    %v384 = vadd.f32 %v112, %v383
    %385 = vmatmul.f32.gmra.mxu0 %v154
    %v386 = vpop.f32.mrf.mxu0
    %v387 = vadd.f32 %v117, %v386
    %388 = vmatmul.f32.gmra.mxu0 %v157
    %v389 = vpop.f32.mrf.mxu0
    %v390 = vadd.f32 %v122, %v389
    %391 = vmatmul.f32.gmra.mxu0 %v160
    %v392 = vpop.f32.mrf.mxu0
    %v393 = vadd.f32 %v127, %v392
    %394 = vmatmul.f32.gmra.mxu0 %v163
    %v395 = vpop.f32.mrf.mxu0
    %v396 = vadd.f32 %v132, %v395
    %397 = vmatmul.f32.gmra.mxu0 %v166
    %v398 = vpop.f32.mrf.mxu0
    %v399 = vadd.f32 %v137, %v398
    %400 = vmatmul.f32.gmra.mxu0 %v169
    %v401 = vpop.f32.mrf.mxu0
    %v402 = vadd.f32 %v142, %v401
    %403 = vmatmul.f32.gmra.mxu0 %v172
    %v404 = vpop.f32.mrf.mxu0
    %v405 = vadd.f32 %v147, %v404
    %406 = vdwg.mxu0
    %407 = vmatpush.xpose.msra.mxu0 %v268
    %408 = vmatpush.xpose.msra.mxu0 %v265
    %409 = vmatpush.xpose.msra.mxu0 %v262
    %410 = vmatpush.xpose.msra.mxu0 %v259
    %411 = vmatpush.xpose.msra.mxu0 %v256
    %412 = vmatpush.xpose.msra.mxu0 %v253
    %413 = vmatpush.xpose.msra.mxu0 %v250
    %414 = vmatpush.xpose.msra.mxu0 %v247
    %415 = vmatpush.xpose.msra.mxu0 %v244
    %416 = vmatpush.xpose.msra.mxu0 %v241
    %417 = vmatpush.xpose.msra.mxu0 %v238
    %418 = vmatpush.xpose.msra.mxu0 %v235
    %419 = vmatpush.xpose.msra.mxu0 %v232
    %420 = vmatpush.xpose.msra.mxu0 %v229
    %421 = vmatpush.xpose.msra.mxu0 %v226
    %422 = vmatpush.xpose.msra.mxu0 %v223
    %423 = vmatmul.f32.gmra.mxu0 %v151
    %v424 = vpop.f32.mrf.mxu0
    %v425 = vadd.f32 %v112, %v424
    %426 = vmatmul.f32.gmra.mxu0 %v154
    %v427 = vpop.f32.mrf.mxu0
    %v428 = vadd.f32 %v117, %v427
    %429 = vmatmul.f32.gmra.mxu0 %v157
    %v430 = vpop.f32.mrf.mxu0
    %v431 = vadd.f32 %v122, %v430
    %432 = vmatmul.f32.gmra.mxu0 %v160
    %v433 = vpop.f32.mrf.mxu0
    %v434 = vadd.f32 %v127, %v433
    %435 = vmatmul.f32.gmra.mxu0 %v163
    %v436 = vpop.f32.mrf.mxu0
    %v437 = vadd.f32 %v132, %v436
    %438 = vmatmul.f32.gmra.mxu0 %v166
    %v439 = vpop.f32.mrf.mxu0
    %v440 = vadd.f32 %v137, %v439
    %441 = vmatmul.f32.gmra.mxu0 %v169
    %v442 = vpop.f32.mrf.mxu0
    %v443 = vadd.f32 %v142, %v442
    %444 = vmatmul.f32.gmra.mxu0 %v172
    %v445 = vpop.f32.mrf.mxu0
    %v446 = vadd.f32 %v147, %v445
    %447 = vdwg.mxu0
    %448 = vmatpush.xpose.msra.mxu0 %v316
    %449 = vmatpush.xpose.msra.mxu0 %v313
    %450 = vmatpush.xpose.msra.mxu0 %v310
    %451 = vmatpush.xpose.msra.mxu0 %v307
    %452 = vmatpush.xpose.msra.mxu0 %v304
    %453 = vmatpush.xpose.msra.mxu0 %v301
    %454 = vmatpush.xpose.msra.mxu0 %v298
    %455 = vmatpush.xpose.msra.mxu0 %v295
    %456 = vmatpush.xpose.msra.mxu0 %v292
    %457 = vmatpush.xpose.msra.mxu0 %v289
    %458 = vmatpush.xpose.msra.mxu0 %v286
    %459 = vmatpush.xpose.msra.mxu0 %v283
    %460 = vmatpush.xpose.msra.mxu0 %v280
    %461 = vmatpush.xpose.msra.mxu0 %v277
    %462 = vmatpush.xpose.msra.mxu0 %v274
    %463 = vmatpush.xpose.msra.mxu0 %v271
    %464 = vmatmul.f32.gmra.mxu0 %v151
    %v465 = vpop.f32.mrf.mxu0
    %v466 = vadd.f32 %v112, %v465
    %467 = vmatmul.f32.gmra.mxu0 %v154
    %v468 = vpop.f32.mrf.mxu0
    %v469 = vadd.f32 %v117, %v468
    %470 = vmatmul.f32.gmra.mxu0 %v157
    %v471 = vpop.f32.mrf.mxu0
    %v472 = vadd.f32 %v122, %v471
    %473 = vmatmul.f32.gmra.mxu0 %v160
    %v474 = vpop.f32.mrf.mxu0
    %v475 = vadd.f32 %v127, %v474
    %476 = vmatmul.f32.gmra.mxu0 %v163
    %v477 = vpop.f32.mrf.mxu0
    %v478 = vadd.f32 %v132, %v477
    %479 = vmatmul.f32.gmra.mxu0 %v166
    %v480 = vpop.f32.mrf.mxu0
    %v481 = vadd.f32 %v137, %v480
    %482 = vmatmul.f32.gmra.mxu0 %v169
    %v483 = vpop.f32.mrf.mxu0
    %v484 = vadd.f32 %v142, %v483
    %485 = vmatmul.f32.gmra.mxu0 %v172
    %v486 = vpop.f32.mrf.mxu0
    %v487 = vadd.f32 %v147, %v486
    %488 = vdwg.mxu0
    %489 = vmatpush.xpose.msra.mxu0 %v364
    %490 = vmatpush.xpose.msra.mxu0 %v361
    %491 = vmatpush.xpose.msra.mxu0 %v358
    %492 = vmatpush.xpose.msra.mxu0 %v355
    %493 = vmatpush.xpose.msra.mxu0 %v352
    %494 = vmatpush.xpose.msra.mxu0 %v349
    %495 = vmatpush.xpose.msra.mxu0 %v346
    %496 = vmatpush.xpose.msra.mxu0 %v343
    %497 = vmatpush.xpose.msra.mxu0 %v340
    %498 = vmatpush.xpose.msra.mxu0 %v337
    %499 = vmatpush.xpose.msra.mxu0 %v334
    %500 = vmatpush.xpose.msra.mxu0 %v331
    %501 = vmatpush.xpose.msra.mxu0 %v328
    %502 = vmatpush.xpose.msra.mxu0 %v325
    %503 = vmatpush.xpose.msra.mxu0 %v322
    %504 = vmatpush.xpose.msra.mxu0 %v319
    %505 = vmatmul.f32.gmra.mxu0 %v151
    %v506 = vpop.f32.mrf.mxu0
    %v507 = vadd.f32 %v112, %v506
    %508 = vmatmul.f32.gmra.mxu0 %v154
    %v509 = vpop.f32.mrf.mxu0
    %v510 = vadd.f32 %v117, %v509
    %511 = vmatmul.f32.gmra.mxu0 %v157
    %v512 = vpop.f32.mrf.mxu0
    %v513 = vadd.f32 %v122, %v512
    %514 = vmatmul.f32.gmra.mxu0 %v160
    %v515 = vpop.f32.mrf.mxu0
    %v516 = vadd.f32 %v127, %v515
    %517 = vmatmul.f32.gmra.mxu0 %v163
    %v518 = vpop.f32.mrf.mxu0
    %v519 = vadd.f32 %v132, %v518
    %520 = vmatmul.f32.gmra.mxu0 %v166
    %v521 = vpop.f32.mrf.mxu0
    %v522 = vadd.f32 %v137, %v521
    %523 = vmatmul.f32.gmra.mxu0 %v169
    %v524 = vpop.f32.mrf.mxu0
    %v525 = vadd.f32 %v142, %v524
    %526 = vmatmul.f32.gmra.mxu0 %v172
    %v527 = vpop.f32.mrf.mxu0
    %v528 = vadd.f32 %v147, %v527
    %529 = vdwg.mxu0
    %v530 = vmax.f32 %v384, 0.0
    %v531 = vmax.f32 %v425, 0.0
    %v532 = vmax.f32 %v466, 0.0
    %v533 = vmax.f32 %v507, 0.0
    %v534 = vmax.f32 %v387, 0.0
    %v535 = vmax.f32 %v428, 0.0
    %v536 = vmax.f32 %v469, 0.0
    %v537 = vmax.f32 %v510, 0.0
    %v538 = vmax.f32 %v390, 0.0
    %v539 = vmax.f32 %v431, 0.0
    %v540 = vmax.f32 %v472, 0.0
    %v541 = vmax.f32 %v513, 0.0
    %v542 = vmax.f32 %v393, 0.0
    %v543 = vmax.f32 %v434, 0.0
    %v544 = vmax.f32 %v475, 0.0
    %v545 = vmax.f32 %v516, 0.0
    %v546 = vmax.f32 %v396, 0.0
    %v547 = vmax.f32 %v437, 0.0
    %v548 = vmax.f32 %v478, 0.0
    %v549 = vmax.f32 %v519, 0.0
    %v550 = vmax.f32 %v399, 0.0
    %v551 = vmax.f32 %v440, 0.0
    %v552 = vmax.f32 %v481, 0.0
    %v553 = vmax.f32 %v522, 0.0
    %v554 = vmax.f32 %v402, 0.0
    %v555 = vmax.f32 %v443, 0.0
    %v556 = vmax.f32 %v484, 0.0
    %v557 = vmax.f32 %v525, 0.0
    %v558 = vmax.f32 %v405, 0.0
    %v559 = vmax.f32 %v446, 0.0
    %v560 = vmax.f32 %v487, 0.0
    %v561 = vmax.f32 %v528, 0.0
    %v562 = vld [vmem:[%s3] sm:$0xff]
    %v563 = vld [vmem:[%s3 + $0x8] sm:$0xff]
    %v564 = vld [vmem:[%s3 + $0x10] sm:$0xff]
    %v565 = vld [vmem:[%s3 + $0x18] sm:$0xff]
    %v566 = vld [vmem:[%s4] sm:$0xff]
    %v567 = vld [vmem:[%s4 + $0x8] sm:$0xff]
    %v568 = vld [vmem:[%s4 + $0x10] sm:$0xff]
    %v569 = vld [vmem:[%s4 + $0x18] sm:$0xff]
    %571 = vset.pattern.permute.xlu0 0
    %572 = vperm.xlu0 %571, %v566
    %v573 = vpop.permute.xlu0 %572
    %576 = vset.pattern.permute.xlu0 0
    %577 = vperm.xlu0 %576, %v567
    %v578 = vpop.permute.xlu0 %577
    %581 = vset.pattern.permute.xlu0 0
    %582 = vperm.xlu0 %581, %v568
    %v583 = vpop.permute.xlu0 %582
    %586 = vset.pattern.permute.xlu0 0
    %587 = vperm.xlu0 %586, %v569
    %v588 = vpop.permute.xlu0 %587
    %vm590 = vcmask 523264
    %v592 = vsel %vm590, %v562, 0
    %v595 = vsel %vm590, %v563, 0
    %v598 = vsel %vm590, %v564, 0
    %v601 = vsel %vm590, %v565, 0
    %603 = vmatpush.msra.mxu0 0.0
    %604 = vmatpush.msra.mxu0 0.0
    %605 = vmatpush.msra.mxu0 0.0
    %606 = vmatpush.msra.mxu0 0.0
    %607 = vmatpush.msra.mxu0 0.0
    %608 = vmatpush.msra.mxu0 0.0
    %609 = vmatpush.msra.mxu0 0.0
    %610 = vmatpush.msra.mxu0 0.0
    %611 = vmatpush.msra.mxu0 %v558
    %612 = vmatpush.msra.mxu0 %v554
    %613 = vmatpush.msra.mxu0 %v550
    %614 = vmatpush.msra.mxu0 %v546
    %615 = vmatpush.msra.mxu0 %v542
    %616 = vmatpush.msra.mxu0 %v538
    %617 = vmatpush.msra.mxu0 %v534
    %618 = vmatpush.msra.mxu0 %v530
    %619 = vmatmul.f32.gmra.mxu0 %v592
    %v620 = vpop.f32.mrf.mxu0
    %v621 = vadd.f32 %v573, %v620
    %622 = vmatmul.f32.gmra.mxu0 %v595
    %v623 = vpop.f32.mrf.mxu0
    %v624 = vadd.f32 %v578, %v623
    %625 = vmatmul.f32.gmra.mxu0 %v598
    %v626 = vpop.f32.mrf.mxu0
    %v627 = vadd.f32 %v583, %v626
    %628 = vmatmul.f32.gmra.mxu0 %v601
    %v629 = vpop.f32.mrf.mxu0
    %v630 = vadd.f32 %v588, %v629
    %631 = vdwg.mxu0
    %632 = vmatpush.msra.mxu0 0.0
    %633 = vmatpush.msra.mxu0 0.0
    %634 = vmatpush.msra.mxu0 0.0
    %635 = vmatpush.msra.mxu0 0.0
    %636 = vmatpush.msra.mxu0 0.0
    %637 = vmatpush.msra.mxu0 0.0
    %638 = vmatpush.msra.mxu0 0.0
    %639 = vmatpush.msra.mxu0 0.0
    %640 = vmatpush.msra.mxu0 %v559
    %641 = vmatpush.msra.mxu0 %v555
    %642 = vmatpush.msra.mxu0 %v551
    %643 = vmatpush.msra.mxu0 %v547
    %644 = vmatpush.msra.mxu0 %v543
    %645 = vmatpush.msra.mxu0 %v539
    %646 = vmatpush.msra.mxu0 %v535
    %647 = vmatpush.msra.mxu0 %v531
    %648 = vmatmul.f32.gmra.mxu0 %v592
    %v649 = vpop.f32.mrf.mxu0
    %v650 = vadd.f32 %v573, %v649
    %651 = vmatmul.f32.gmra.mxu0 %v595
    %v652 = vpop.f32.mrf.mxu0
    %v653 = vadd.f32 %v578, %v652
    %654 = vmatmul.f32.gmra.mxu0 %v598
    %v655 = vpop.f32.mrf.mxu0
    %v656 = vadd.f32 %v583, %v655
    %657 = vmatmul.f32.gmra.mxu0 %v601
    %v658 = vpop.f32.mrf.mxu0
    %v659 = vadd.f32 %v588, %v658
    %660 = vdwg.mxu0
    %661 = vmatpush.msra.mxu0 0.0
    %662 = vmatpush.msra.mxu0 0.0
    %663 = vmatpush.msra.mxu0 0.0
    %664 = vmatpush.msra.mxu0 0.0
    %665 = vmatpush.msra.mxu0 0.0
    %666 = vmatpush.msra.mxu0 0.0
    %667 = vmatpush.msra.mxu0 0.0
    %668 = vmatpush.msra.mxu0 0.0
    %669 = vmatpush.msra.mxu0 %v560
    %670 = vmatpush.msra.mxu0 %v556
    %671 = vmatpush.msra.mxu0 %v552
    %672 = vmatpush.msra.mxu0 %v548
    %673 = vmatpush.msra.mxu0 %v544
    %674 = vmatpush.msra.mxu0 %v540
    %675 = vmatpush.msra.mxu0 %v536
    %676 = vmatpush.msra.mxu0 %v532
    %677 = vmatmul.f32.gmra.mxu0 %v592
    %v678 = vpop.f32.mrf.mxu0
    %v679 = vadd.f32 %v573, %v678
    %680 = vmatmul.f32.gmra.mxu0 %v595
    %v681 = vpop.f32.mrf.mxu0
    %v682 = vadd.f32 %v578, %v681
    %683 = vmatmul.f32.gmra.mxu0 %v598
    %v684 = vpop.f32.mrf.mxu0
    %v685 = vadd.f32 %v583, %v684
    %686 = vmatmul.f32.gmra.mxu0 %v601
    %v687 = vpop.f32.mrf.mxu0
    %v688 = vadd.f32 %v588, %v687
    %689 = vdwg.mxu0
    %690 = vmatpush.msra.mxu0 0.0
    %691 = vmatpush.msra.mxu0 0.0
    %692 = vmatpush.msra.mxu0 0.0
    %693 = vmatpush.msra.mxu0 0.0
    %694 = vmatpush.msra.mxu0 0.0
    %695 = vmatpush.msra.mxu0 0.0
    %696 = vmatpush.msra.mxu0 0.0
    %697 = vmatpush.msra.mxu0 0.0
    %698 = vmatpush.msra.mxu0 %v561
    %699 = vmatpush.msra.mxu0 %v557
    %700 = vmatpush.msra.mxu0 %v553
    %701 = vmatpush.msra.mxu0 %v549
    %702 = vmatpush.msra.mxu0 %v545
    %703 = vmatpush.msra.mxu0 %v541
    %704 = vmatpush.msra.mxu0 %v537
    %705 = vmatpush.msra.mxu0 %v533
    %706 = vmatmul.f32.gmra.mxu0 %v592
    %v707 = vpop.f32.mrf.mxu0
    %v708 = vadd.f32 %v573, %v707
    %709 = vmatmul.f32.gmra.mxu0 %v595
    %v710 = vpop.f32.mrf.mxu0
    %v711 = vadd.f32 %v578, %v710
    %712 = vmatmul.f32.gmra.mxu0 %v598
    %v713 = vpop.f32.mrf.mxu0
    %v714 = vadd.f32 %v583, %v713
    %715 = vmatmul.f32.gmra.mxu0 %v601
    %v716 = vpop.f32.mrf.mxu0
    %v717 = vadd.f32 %v588, %v716
    %718 = vdwg.mxu0
    %v719 = vmax.f32 %v621, 0.0
    %v720 = vmax.f32 %v650, 0.0
    %v721 = vmax.f32 %v679, 0.0
    %v722 = vmax.f32 %v708, 0.0
    %v723 = vmax.f32 %v624, 0.0
    %v724 = vmax.f32 %v653, 0.0
    %v725 = vmax.f32 %v682, 0.0
    %v726 = vmax.f32 %v711, 0.0
    %v727 = vmax.f32 %v627, 0.0
    %v728 = vmax.f32 %v656, 0.0
    %v729 = vmax.f32 %v685, 0.0
    %v730 = vmax.f32 %v714, 0.0
    %v731 = vmax.f32 %v630, 0.0
    %v732 = vmax.f32 %v659, 0.0
    %v733 = vmax.f32 %v688, 0.0
    %v734 = vmax.f32 %v717, 0.0
    %v735 = vld [vmem:[%s5] sm:$0xff]
    %v736 = vld [vmem:[%s5 + $0x8] sm:$0xff]
    %v737 = vld [vmem:[%s5 + $0x10] sm:$0xff]
    %v738 = vld [vmem:[%s5 + $0x18] sm:$0xff]
    %v739 = vld [vmem:[#allocation2] sm:$0x1]
    %741 = vset.pattern.permute.xlu0 0
    %742 = vperm.xlu0 %741, %v735
    %v743 = vpop.permute.xlu0 %742
    %746 = vset.pattern.permute.xlu0 0
    %747 = vperm.xlu0 %746, %v736
    %v748 = vpop.permute.xlu0 %747
    %751 = vset.pattern.permute.xlu0 0
    %752 = vperm.xlu0 %751, %v737
    %v753 = vpop.permute.xlu0 %752
    %756 = vset.pattern.permute.xlu0 0
    %757 = vperm.xlu0 %756, %v738
    %v758 = vpop.permute.xlu0 %757
    %v760 = vmul.f32 %v743, %v719
    %v761 = vmul.f32 %v743, %v720
    %v762 = vmul.f32 %v743, %v721
    %v763 = vmul.f32 %v743, %v722
    %v764 = vmul.f32 %v748, %v723
    %v765 = vmul.f32 %v748, %v724
    %v766 = vmul.f32 %v748, %v725
    %v767 = vmul.f32 %v748, %v726
    %v768 = vmul.f32 %v753, %v727
    %v769 = vmul.f32 %v753, %v728
    %v770 = vmul.f32 %v753, %v729
    %v771 = vmul.f32 %v753, %v730
    %v772 = vmul.f32 %v758, %v731
    %v773 = vmul.f32 %v758, %v732
    %v774 = vmul.f32 %v758, %v733
    %v775 = vmul.f32 %v758, %v734
    %v776 = vadd.f32 %v760, %v764
    %v777 = vadd.f32 %v776, %v768
    %v778 = vadd.f32 %v777, %v772
    %v779 = vrot.slane %v778, 4
    %v780 = vadd.f32 %v778, %v779
    %v781 = vrot.slane %v780, 2
    %v782 = vadd.f32 %v780, %v781
    %v783 = vrot.slane %v782, 1
    %v784 = vadd.f32 %v782, %v783
    %v785 = vadd.f32 %v761, %v765
    %v786 = vadd.f32 %v785, %v769
    %v787 = vadd.f32 %v786, %v773
    %v788 = vrot.slane %v787, 4
    %v789 = vadd.f32 %v787, %v788
    %v790 = vrot.slane %v789, 2
    %v791 = vadd.f32 %v789, %v790
    %v792 = vrot.slane %v791, 1
    %v793 = vadd.f32 %v791, %v792
    %v794 = vadd.f32 %v762, %v766
    %v795 = vadd.f32 %v794, %v770
    %v796 = vadd.f32 %v795, %v774
    %v797 = vrot.slane %v796, 4
    %v798 = vadd.f32 %v796, %v797
    %v799 = vrot.slane %v798, 2
    %v800 = vadd.f32 %v798, %v799
    %v801 = vrot.slane %v800, 1
    %v802 = vadd.f32 %v800, %v801
    %v803 = vadd.f32 %v763, %v767
    %v804 = vadd.f32 %v803, %v771
    %v805 = vadd.f32 %v804, %v775
    %v806 = vrot.slane %v805, 4
    %v807 = vadd.f32 %v805, %v806
    %v808 = vrot.slane %v807, 2
    %v809 = vadd.f32 %v807, %v808
    %v810 = vrot.slane %v809, 1
    %v811 = vadd.f32 %v809, %v810
    %813 = vset.pattern.permute.xlu0 0
    %814 = vperm.xlu0 %813, %v739
    %v815 = vpop.permute.xlu0 %814
    %v817 = vperm.slane %v815, 0
    %v818 = vadd.f32 %v784, %v817
    %v819 = vadd.f32 %v793, %v817
    %v820 = vadd.f32 %v802, %v817
    %v821 = vadd.f32 %v811, %v817
    %v822 = vxor.u32 %v818, 2147483648
    %v823 = vxor.u32 %v819, 2147483648
    %v824 = vxor.u32 %v820, 2147483648
    %v825 = vxor.u32 %v821, 2147483648
    %v826 = vmul.f32 %v822, 1.442695
    %v827 = vpow.pop %v826
    %v828 = vmul.f32 %v823, 1.442695
    %v829 = vpow.pop %v828
    %v830 = vmul.f32 %v824, 1.442695
    %v831 = vpow.pop %v830
    %v832 = vmul.f32 %v825, 1.442695
    %v833 = vpow.pop %v832
    %v834 = vadd.f32 %v827, 1.0
    %v835 = vadd.f32 %v829, 1.0
    %v836 = vadd.f32 %v831, 1.0
    %v837 = vadd.f32 %v833, 1.0
    %v838 = vrcp.pop %v834
    %v839 = vmul.f32 %v834, %v838
    %v840 = vsub.f32 1.0, %v839
    %v841 = vmul.f32 %v838, %v840
    %v842 = vadd.f32 %v838, %v841
    %vm843 = vweird.f32 %v834
    %vm844 = vweird.f32 %v838
    %vm845 = vmor %vm843, %vm844
    %v846 = vsel %vm845, %v838, %v842
    %v847 = vand.u32 2147483647, %v834
    %vm848 = vcmp.eq.f32.partialorder %v847, 8.507059e+37
    %v849 = vand.u32 %v834, 2147483648
    %v850 = vor.u32 1.1754944e-38, %v849
    %v851 = vsel %vm848, %v850, %v846
    %v852 = vmul.f32 1.0, %v851
    %v853 = vrcp.pop %v835
    %v854 = vmul.f32 %v835, %v853
    %v855 = vsub.f32 1.0, %v854
    %v856 = vmul.f32 %v853, %v855
    %v857 = vadd.f32 %v853, %v856
    %vm858 = vweird.f32 %v835
    %vm859 = vweird.f32 %v853
    %vm860 = vmor %vm858, %vm859
    %v861 = vsel %vm860, %v853, %v857
    %v862 = vand.u32 2147483647, %v835
    %vm863 = vcmp.eq.f32.partialorder %v862, 8.507059e+37
    %v864 = vand.u32 %v835, 2147483648
    %v865 = vor.u32 1.1754944e-38, %v864
    %v866 = vsel %vm863, %v865, %v861
    %v867 = vmul.f32 1.0, %v866
    %v868 = vrcp.pop %v836
    %v869 = vmul.f32 %v836, %v868
    %v870 = vsub.f32 1.0, %v869
    %v871 = vmul.f32 %v868, %v870
    %v872 = vadd.f32 %v868, %v871
    %vm873 = vweird.f32 %v836
    %vm874 = vweird.f32 %v868
    %vm875 = vmor %vm873, %vm874
    %v876 = vsel %vm875, %v868, %v872
    %v877 = vand.u32 2147483647, %v836
    %vm878 = vcmp.eq.f32.partialorder %v877, 8.507059e+37
    %v879 = vand.u32 %v836, 2147483648
    %v880 = vor.u32 1.1754944e-38, %v879
    %v881 = vsel %vm878, %v880, %v876
    %v882 = vmul.f32 1.0, %v881
    %v883 = vrcp.pop %v837
    %v884 = vmul.f32 %v837, %v883
    %v885 = vsub.f32 1.0, %v884
    %v886 = vmul.f32 %v883, %v885
    %v887 = vadd.f32 %v883, %v886
    %vm888 = vweird.f32 %v837
    %vm889 = vweird.f32 %v883
    %vm890 = vmor %vm888, %vm889
    %v891 = vsel %vm890, %v883, %v887
    %v892 = vand.u32 2147483647, %v837
    %vm893 = vcmp.eq.f32.partialorder %v892, 8.507059e+37
    %v894 = vand.u32 %v837, 2147483648
    %v895 = vor.u32 1.1754944e-38, %v894
    %v896 = vsel %vm893, %v895, %v891
    %v897 = vmul.f32 1.0, %v896
    %v902 = vrot.slane %v867, 7
    %v903 = vrot.slane %v882, 6
    %v904 = vrot.slane %v897, 5
    %vm905 = vcmask 1040384
    %v906 = vsel %vm905, %v852, %v902
    %vm907 = vcmask 1042434
    %v908 = vsel %vm907, %v903, %v904
    %vm909 = vcmask 1041408
    %v910 = vsel %vm909, %v906, %v908
    %v912 = vlaneseq
    %vm913 = vcmp.ge.s32.totalorder %v912, 0
    %vm914 = vcmp.lt.s32.totalorder %v912, 512
    %vm915 = vmand %vm913, %vm914
    %916 = vst.msk [vmem:[#allocation3] sm:$0xf] %vm915, %v910
    %v917 = vld [vmem:[%s0 + $0x200] sm:$0xff]
    %v918 = vld [vmem:[%s0 + $0x208] sm:$0xff]
    %v919 = vld [vmem:[%s0 + $0x210] sm:$0xff]
    %v920 = vld [vmem:[%s0 + $0x218] sm:$0xff]
    %v921 = vld [vmem:[%s0 + $0x220] sm:$0xff]
    %v922 = vld [vmem:[%s0 + $0x228] sm:$0xff]
    %v923 = vld [vmem:[%s0 + $0x230] sm:$0xff]
    %v924 = vld [vmem:[%s0 + $0x238] sm:$0xff]
    %v925 = vld [vmem:[%s0 + $0x240] sm:$0xff]
    %v926 = vld [vmem:[%s0 + $0x248] sm:$0xff]
    %v927 = vld [vmem:[%s0 + $0x250] sm:$0xff]
    %v928 = vld [vmem:[%s0 + $0x258] sm:$0xff]
    %v929 = vld [vmem:[%s0 + $0x260] sm:$0xff]
    %v930 = vld [vmem:[%s0 + $0x268] sm:$0xff]
    %v931 = vld [vmem:[%s0 + $0x270] sm:$0xff]
    %v932 = vld [vmem:[%s0 + $0x278] sm:$0xff]
    %v933 = vld [vmem:[%s0 + $0x280] sm:$0xff]
    %v934 = vld [vmem:[%s0 + $0x288] sm:$0xff]
    %v935 = vld [vmem:[%s0 + $0x290] sm:$0xff]
    %v936 = vld [vmem:[%s0 + $0x298] sm:$0xff]
    %v937 = vld [vmem:[%s0 + $0x2a0] sm:$0xff]
    %v938 = vld [vmem:[%s0 + $0x2a8] sm:$0xff]
    %v939 = vld [vmem:[%s0 + $0x2b0] sm:$0xff]
    %v940 = vld [vmem:[%s0 + $0x2b8] sm:$0xff]
    %v941 = vld [vmem:[%s0 + $0x2c0] sm:$0xff]
    %v942 = vld [vmem:[%s0 + $0x2c8] sm:$0xff]
    %v943 = vld [vmem:[%s0 + $0x2d0] sm:$0xff]
    %v944 = vld [vmem:[%s0 + $0x2d8] sm:$0xff]
    %v945 = vld [vmem:[%s0 + $0x2e0] sm:$0xff]
    %v946 = vld [vmem:[%s0 + $0x2e8] sm:$0xff]
    %v947 = vld [vmem:[%s0 + $0x2f0] sm:$0xff]
    %v948 = vld [vmem:[%s0 + $0x2f8] sm:$0xff]
    %v949 = vld [vmem:[%s0 + $0x300] sm:$0xff]
    %v950 = vld [vmem:[%s0 + $0x308] sm:$0xff]
    %v951 = vld [vmem:[%s0 + $0x310] sm:$0xff]
    %v952 = vld [vmem:[%s0 + $0x318] sm:$0xff]
    %v953 = vld [vmem:[%s0 + $0x320] sm:$0xff]
    %v954 = vld [vmem:[%s0 + $0x328] sm:$0xff]
    %v955 = vld [vmem:[%s0 + $0x330] sm:$0xff]
    %v956 = vld [vmem:[%s0 + $0x338] sm:$0xff]
    %v957 = vld [vmem:[%s0 + $0x340] sm:$0xff]
    %v958 = vld [vmem:[%s0 + $0x348] sm:$0xff]
    %v959 = vld [vmem:[%s0 + $0x350] sm:$0xff]
    %v960 = vld [vmem:[%s0 + $0x358] sm:$0xff]
    %v961 = vld [vmem:[%s0 + $0x360] sm:$0xff]
    %v962 = vld [vmem:[%s0 + $0x368] sm:$0xff]
    %v963 = vld [vmem:[%s0 + $0x370] sm:$0xff]
    %v964 = vld [vmem:[%s0 + $0x378] sm:$0xff]
    %v965 = vld [vmem:[%s0 + $0x380] sm:$0xff]
    %v966 = vld [vmem:[%s0 + $0x388] sm:$0xff]
    %v967 = vld [vmem:[%s0 + $0x390] sm:$0xff]
    %v968 = vld [vmem:[%s0 + $0x398] sm:$0xff]
    %v969 = vld [vmem:[%s0 + $0x3a0] sm:$0xff]
    %v970 = vld [vmem:[%s0 + $0x3a8] sm:$0xff]
    %v971 = vld [vmem:[%s0 + $0x3b0] sm:$0xff]
    %v972 = vld [vmem:[%s0 + $0x3b8] sm:$0xff]
    %v973 = vld [vmem:[%s0 + $0x3c0] sm:$0xff]
    %v974 = vld [vmem:[%s0 + $0x3c8] sm:$0xff]
    %v975 = vld [vmem:[%s0 + $0x3d0] sm:$0xff]
    %v976 = vld [vmem:[%s0 + $0x3d8] sm:$0xff]
    %v977 = vld [vmem:[%s0 + $0x3e0] sm:$0xff]
    %v978 = vld [vmem:[%s0 + $0x3e8] sm:$0xff]
    %v979 = vld [vmem:[%s0 + $0x3f0] sm:$0xff]
    %v980 = vld [vmem:[%s0 + $0x3f8] sm:$0xff]
    %v981 = vld [vmem:[%s1] sm:$0xff]
    %v982 = vld [vmem:[%s1 + $0x8] sm:$0xff]
    %v983 = vld [vmem:[%s1 + $0x10] sm:$0xff]
    %v984 = vld [vmem:[%s1 + $0x18] sm:$0xff]
    %v985 = vld [vmem:[%s1 + $0x20] sm:$0xff]
    %v986 = vld [vmem:[%s1 + $0x28] sm:$0xff]
    %v987 = vld [vmem:[%s1 + $0x30] sm:$0xff]
    %v988 = vld [vmem:[%s1 + $0x38] sm:$0xff]
    %v989 = vld [vmem:[%s2] sm:$0xff]
    %v990 = vld [vmem:[%s2 + $0x8] sm:$0xff]
    %v991 = vld [vmem:[%s2 + $0x10] sm:$0xff]
    %v992 = vld [vmem:[%s2 + $0x18] sm:$0xff]
    %v993 = vld [vmem:[%s2 + $0x20] sm:$0xff]
    %v994 = vld [vmem:[%s2 + $0x28] sm:$0xff]
    %v995 = vld [vmem:[%s2 + $0x30] sm:$0xff]
    %v996 = vld [vmem:[%s2 + $0x38] sm:$0xff]
    %998 = vset.pattern.permute.xlu0 0
    %999 = vperm.xlu0 %998, %v989
    %v1000 = vpop.permute.xlu0 %999
    %1003 = vset.pattern.permute.xlu0 0
    %1004 = vperm.xlu0 %1003, %v990
    %v1005 = vpop.permute.xlu0 %1004
    %1008 = vset.pattern.permute.xlu0 0
    %1009 = vperm.xlu0 %1008, %v991
    %v1010 = vpop.permute.xlu0 %1009
    %1013 = vset.pattern.permute.xlu0 0
    %1014 = vperm.xlu0 %1013, %v992
    %v1015 = vpop.permute.xlu0 %1014
    %1018 = vset.pattern.permute.xlu0 0
    %1019 = vperm.xlu0 %1018, %v993
    %v1020 = vpop.permute.xlu0 %1019
    %1023 = vset.pattern.permute.xlu0 0
    %1024 = vperm.xlu0 %1023, %v994
    %v1025 = vpop.permute.xlu0 %1024
    %1028 = vset.pattern.permute.xlu0 0
    %1029 = vperm.xlu0 %1028, %v995
    %v1030 = vpop.permute.xlu0 %1029
    %1033 = vset.pattern.permute.xlu0 0
    %1034 = vperm.xlu0 %1033, %v996
    %v1035 = vpop.permute.xlu0 %1034
    %v1038 = vsel %vm149, %v981, 0
    %v1041 = vsel %vm149, %v982, 0
    %v1044 = vsel %vm149, %v983, 0
    %v1047 = vsel %vm149, %v984, 0
    %v1050 = vsel %vm149, %v985, 0
    %v1053 = vsel %vm149, %v986, 0
    %v1056 = vsel %vm149, %v987, 0
    %v1059 = vsel %vm149, %v988, 0
    %v1062 = vsel %vm149, %v917, 0
    %v1065 = vsel %vm149, %v918, 0
    %v1068 = vsel %vm149, %v919, 0
    %v1071 = vsel %vm149, %v920, 0
    %v1074 = vsel %vm149, %v921, 0
    %v1077 = vsel %vm149, %v922, 0
    %v1080 = vsel %vm149, %v923, 0
    %v1083 = vsel %vm149, %v924, 0
    %v1086 = vsel %vm149, %v925, 0
    %v1089 = vsel %vm149, %v926, 0
    %v1092 = vsel %vm149, %v927, 0
    %v1095 = vsel %vm149, %v928, 0
    %v1098 = vsel %vm149, %v929, 0
    %v1101 = vsel %vm149, %v930, 0
    %v1104 = vsel %vm149, %v931, 0
    %v1107 = vsel %vm149, %v932, 0
    %v1110 = vsel %vm149, %v933, 0
    %v1113 = vsel %vm149, %v934, 0
    %v1116 = vsel %vm149, %v935, 0
    %v1119 = vsel %vm149, %v936, 0
    %v1122 = vsel %vm149, %v937, 0
    %v1125 = vsel %vm149, %v938, 0
    %v1128 = vsel %vm149, %v939, 0
    %v1131 = vsel %vm149, %v940, 0
    %v1134 = vsel %vm149, %v941, 0
    %v1137 = vsel %vm149, %v942, 0
    %v1140 = vsel %vm149, %v943, 0
    %v1143 = vsel %vm149, %v944, 0
    %v1146 = vsel %vm149, %v945, 0
    %v1149 = vsel %vm149, %v946, 0
    %v1152 = vsel %vm149, %v947, 0
    %v1155 = vsel %vm149, %v948, 0
    %v1158 = vsel %vm149, %v949, 0
    %v1161 = vsel %vm149, %v950, 0
    %v1164 = vsel %vm149, %v951, 0
    %v1167 = vsel %vm149, %v952, 0
    %v1170 = vsel %vm149, %v953, 0
    %v1173 = vsel %vm149, %v954, 0
    %v1176 = vsel %vm149, %v955, 0
    %v1179 = vsel %vm149, %v956, 0
    %v1182 = vsel %vm149, %v957, 0
    %v1185 = vsel %vm149, %v958, 0
    %v1188 = vsel %vm149, %v959, 0
    %v1191 = vsel %vm149, %v960, 0
    %v1194 = vsel %vm149, %v961, 0
    %v1197 = vsel %vm149, %v962, 0
    %v1200 = vsel %vm149, %v963, 0
    %v1203 = vsel %vm149, %v964, 0
    %v1206 = vsel %vm149, %v965, 0
    %v1209 = vsel %vm149, %v966, 0
    %v1212 = vsel %vm149, %v967, 0
    %v1215 = vsel %vm149, %v968, 0
    %v1218 = vsel %vm149, %v969, 0
    %v1221 = vsel %vm149, %v970, 0
    %v1224 = vsel %vm149, %v971, 0
    %v1227 = vsel %vm149, %v972, 0
    %v1230 = vsel %vm149, %v973, 0
    %v1233 = vsel %vm149, %v974, 0
    %v1236 = vsel %vm149, %v975, 0
    %v1239 = vsel %vm149, %v976, 0
    %v1242 = vsel %vm149, %v977, 0
    %v1245 = vsel %vm149, %v978, 0
    %v1248 = vsel %vm149, %v979, 0
    %v1251 = vsel %vm149, %v980, 0
    %1253 = vmatpush.xpose.msra.mxu0 %v1107
    %1254 = vmatpush.xpose.msra.mxu0 %v1104
    %1255 = vmatpush.xpose.msra.mxu0 %v1101
    %1256 = vmatpush.xpose.msra.mxu0 %v1098
    %1257 = vmatpush.xpose.msra.mxu0 %v1095
    %1258 = vmatpush.xpose.msra.mxu0 %v1092
    %1259 = vmatpush.xpose.msra.mxu0 %v1089
    %1260 = vmatpush.xpose.msra.mxu0 %v1086
    %1261 = vmatpush.xpose.msra.mxu0 %v1083
    %1262 = vmatpush.xpose.msra.mxu0 %v1080
    %1263 = vmatpush.xpose.msra.mxu0 %v1077
    %1264 = vmatpush.xpose.msra.mxu0 %v1074
    %1265 = vmatpush.xpose.msra.mxu0 %v1071
    %1266 = vmatpush.xpose.msra.mxu0 %v1068
    %1267 = vmatpush.xpose.msra.mxu0 %v1065
    %1268 = vmatpush.xpose.msra.mxu0 %v1062
    %1269 = vmatmul.f32.gmra.mxu0 %v1038
    %v1270 = vpop.f32.mrf.mxu0
    %v1271 = vadd.f32 %v1000, %v1270
    %1272 = vmatmul.f32.gmra.mxu0 %v1041
    %v1273 = vpop.f32.mrf.mxu0
    %v1274 = vadd.f32 %v1005, %v1273
    %1275 = vmatmul.f32.gmra.mxu0 %v1044
    %v1276 = vpop.f32.mrf.mxu0
    %v1277 = vadd.f32 %v1010, %v1276
    %1278 = vmatmul.f32.gmra.mxu0 %v1047
    %v1279 = vpop.f32.mrf.mxu0
    %v1280 = vadd.f32 %v1015, %v1279
    %1281 = vmatmul.f32.gmra.mxu0 %v1050
    %v1282 = vpop.f32.mrf.mxu0
    %v1283 = vadd.f32 %v1020, %v1282
    %1284 = vmatmul.f32.gmra.mxu0 %v1053
    %v1285 = vpop.f32.mrf.mxu0
    %v1286 = vadd.f32 %v1025, %v1285
    %1287 = vmatmul.f32.gmra.mxu0 %v1056
    %v1288 = vpop.f32.mrf.mxu0
    %v1289 = vadd.f32 %v1030, %v1288
    %1290 = vmatmul.f32.gmra.mxu0 %v1059
    %v1291 = vpop.f32.mrf.mxu0
    %v1292 = vadd.f32 %v1035, %v1291
    %1293 = vdwg.mxu0
    %1294 = vmatpush.xpose.msra.mxu0 %v1155
    %1295 = vmatpush.xpose.msra.mxu0 %v1152
    %1296 = vmatpush.xpose.msra.mxu0 %v1149
    %1297 = vmatpush.xpose.msra.mxu0 %v1146
    %1298 = vmatpush.xpose.msra.mxu0 %v1143
    %1299 = vmatpush.xpose.msra.mxu0 %v1140
    %1300 = vmatpush.xpose.msra.mxu0 %v1137
    %1301 = vmatpush.xpose.msra.mxu0 %v1134
    %1302 = vmatpush.xpose.msra.mxu0 %v1131
    %1303 = vmatpush.xpose.msra.mxu0 %v1128
    %1304 = vmatpush.xpose.msra.mxu0 %v1125
    %1305 = vmatpush.xpose.msra.mxu0 %v1122
    %1306 = vmatpush.xpose.msra.mxu0 %v1119
    %1307 = vmatpush.xpose.msra.mxu0 %v1116
    %1308 = vmatpush.xpose.msra.mxu0 %v1113
    %1309 = vmatpush.xpose.msra.mxu0 %v1110
    %1310 = vmatmul.f32.gmra.mxu0 %v1038
    %v1311 = vpop.f32.mrf.mxu0
    %v1312 = vadd.f32 %v1000, %v1311
    %1313 = vmatmul.f32.gmra.mxu0 %v1041
    %v1314 = vpop.f32.mrf.mxu0
    %v1315 = vadd.f32 %v1005, %v1314
    %1316 = vmatmul.f32.gmra.mxu0 %v1044
    %v1317 = vpop.f32.mrf.mxu0
    %v1318 = vadd.f32 %v1010, %v1317
    %1319 = vmatmul.f32.gmra.mxu0 %v1047
    %v1320 = vpop.f32.mrf.mxu0
    %v1321 = vadd.f32 %v1015, %v1320
    %1322 = vmatmul.f32.gmra.mxu0 %v1050
    %v1323 = vpop.f32.mrf.mxu0
    %v1324 = vadd.f32 %v1020, %v1323
    %1325 = vmatmul.f32.gmra.mxu0 %v1053
    %v1326 = vpop.f32.mrf.mxu0
    %v1327 = vadd.f32 %v1025, %v1326
    %1328 = vmatmul.f32.gmra.mxu0 %v1056
    %v1329 = vpop.f32.mrf.mxu0
    %v1330 = vadd.f32 %v1030, %v1329
    %1331 = vmatmul.f32.gmra.mxu0 %v1059
    %v1332 = vpop.f32.mrf.mxu0
    %v1333 = vadd.f32 %v1035, %v1332
    %1334 = vdwg.mxu0
    %1335 = vmatpush.xpose.msra.mxu0 %v1203
    %1336 = vmatpush.xpose.msra.mxu0 %v1200
    %1337 = vmatpush.xpose.msra.mxu0 %v1197
    %1338 = vmatpush.xpose.msra.mxu0 %v1194
    %1339 = vmatpush.xpose.msra.mxu0 %v1191
    %1340 = vmatpush.xpose.msra.mxu0 %v1188
    %1341 = vmatpush.xpose.msra.mxu0 %v1185
    %1342 = vmatpush.xpose.msra.mxu0 %v1182
    %1343 = vmatpush.xpose.msra.mxu0 %v1179
    %1344 = vmatpush.xpose.msra.mxu0 %v1176
    %1345 = vmatpush.xpose.msra.mxu0 %v1173
    %1346 = vmatpush.xpose.msra.mxu0 %v1170
    %1347 = vmatpush.xpose.msra.mxu0 %v1167
    %1348 = vmatpush.xpose.msra.mxu0 %v1164
    %1349 = vmatpush.xpose.msra.mxu0 %v1161
    %1350 = vmatpush.xpose.msra.mxu0 %v1158
    %1351 = vmatmul.f32.gmra.mxu0 %v1038
    %v1352 = vpop.f32.mrf.mxu0
    %v1353 = vadd.f32 %v1000, %v1352
    %1354 = vmatmul.f32.gmra.mxu0 %v1041
    %v1355 = vpop.f32.mrf.mxu0
    %v1356 = vadd.f32 %v1005, %v1355
    %1357 = vmatmul.f32.gmra.mxu0 %v1044
    %v1358 = vpop.f32.mrf.mxu0
    %v1359 = vadd.f32 %v1010, %v1358
    %1360 = vmatmul.f32.gmra.mxu0 %v1047
    %v1361 = vpop.f32.mrf.mxu0
    %v1362 = vadd.f32 %v1015, %v1361
    %1363 = vmatmul.f32.gmra.mxu0 %v1050
    %v1364 = vpop.f32.mrf.mxu0
    %v1365 = vadd.f32 %v1020, %v1364
    %1366 = vmatmul.f32.gmra.mxu0 %v1053
    %v1367 = vpop.f32.mrf.mxu0
    %v1368 = vadd.f32 %v1025, %v1367
    %1369 = vmatmul.f32.gmra.mxu0 %v1056
    %v1370 = vpop.f32.mrf.mxu0
    %v1371 = vadd.f32 %v1030, %v1370
    %1372 = vmatmul.f32.gmra.mxu0 %v1059
    %v1373 = vpop.f32.mrf.mxu0
    %v1374 = vadd.f32 %v1035, %v1373
    %1375 = vdwg.mxu0
    %1376 = vmatpush.xpose.msra.mxu0 %v1251
    %1377 = vmatpush.xpose.msra.mxu0 %v1248
    %1378 = vmatpush.xpose.msra.mxu0 %v1245
    %1379 = vmatpush.xpose.msra.mxu0 %v1242
    %1380 = vmatpush.xpose.msra.mxu0 %v1239
    %1381 = vmatpush.xpose.msra.mxu0 %v1236
    %1382 = vmatpush.xpose.msra.mxu0 %v1233
    %1383 = vmatpush.xpose.msra.mxu0 %v1230
    %1384 = vmatpush.xpose.msra.mxu0 %v1227
    %1385 = vmatpush.xpose.msra.mxu0 %v1224
    %1386 = vmatpush.xpose.msra.mxu0 %v1221
    %1387 = vmatpush.xpose.msra.mxu0 %v1218
    %1388 = vmatpush.xpose.msra.mxu0 %v1215
    %1389 = vmatpush.xpose.msra.mxu0 %v1212
    %1390 = vmatpush.xpose.msra.mxu0 %v1209
    %1391 = vmatpush.xpose.msra.mxu0 %v1206
    %1392 = vmatmul.f32.gmra.mxu0 %v1038
    %v1393 = vpop.f32.mrf.mxu0
    %v1394 = vadd.f32 %v1000, %v1393
    %1395 = vmatmul.f32.gmra.mxu0 %v1041
    %v1396 = vpop.f32.mrf.mxu0
    %v1397 = vadd.f32 %v1005, %v1396
    %1398 = vmatmul.f32.gmra.mxu0 %v1044
    %v1399 = vpop.f32.mrf.mxu0
    %v1400 = vadd.f32 %v1010, %v1399
    %1401 = vmatmul.f32.gmra.mxu0 %v1047
    %v1402 = vpop.f32.mrf.mxu0
    %v1403 = vadd.f32 %v1015, %v1402
    %1404 = vmatmul.f32.gmra.mxu0 %v1050
    %v1405 = vpop.f32.mrf.mxu0
    %v1406 = vadd.f32 %v1020, %v1405
    %1407 = vmatmul.f32.gmra.mxu0 %v1053
    %v1408 = vpop.f32.mrf.mxu0
    %v1409 = vadd.f32 %v1025, %v1408
    %1410 = vmatmul.f32.gmra.mxu0 %v1056
    %v1411 = vpop.f32.mrf.mxu0
    %v1412 = vadd.f32 %v1030, %v1411
    %1413 = vmatmul.f32.gmra.mxu0 %v1059
    %v1414 = vpop.f32.mrf.mxu0
    %v1415 = vadd.f32 %v1035, %v1414
    %1416 = vdwg.mxu0
    %v1417 = vmax.f32 %v1271, 0.0
    %v1418 = vmax.f32 %v1312, 0.0
    %v1419 = vmax.f32 %v1353, 0.0
    %v1420 = vmax.f32 %v1394, 0.0
    %v1421 = vmax.f32 %v1274, 0.0
    %v1422 = vmax.f32 %v1315, 0.0
    %v1423 = vmax.f32 %v1356, 0.0
    %v1424 = vmax.f32 %v1397, 0.0
    %v1425 = vmax.f32 %v1277, 0.0
    %v1426 = vmax.f32 %v1318, 0.0
    %v1427 = vmax.f32 %v1359, 0.0
    %v1428 = vmax.f32 %v1400, 0.0
    %v1429 = vmax.f32 %v1280, 0.0
    %v1430 = vmax.f32 %v1321, 0.0
    %v1431 = vmax.f32 %v1362, 0.0
    %v1432 = vmax.f32 %v1403, 0.0
    %v1433 = vmax.f32 %v1283, 0.0
    %v1434 = vmax.f32 %v1324, 0.0
    %v1435 = vmax.f32 %v1365, 0.0
    %v1436 = vmax.f32 %v1406, 0.0
    %v1437 = vmax.f32 %v1286, 0.0
    %v1438 = vmax.f32 %v1327, 0.0
    %v1439 = vmax.f32 %v1368, 0.0
    %v1440 = vmax.f32 %v1409, 0.0
    %v1441 = vmax.f32 %v1289, 0.0
    %v1442 = vmax.f32 %v1330, 0.0
    %v1443 = vmax.f32 %v1371, 0.0
    %v1444 = vmax.f32 %v1412, 0.0
    %v1445 = vmax.f32 %v1292, 0.0
    %v1446 = vmax.f32 %v1333, 0.0
    %v1447 = vmax.f32 %v1374, 0.0
    %v1448 = vmax.f32 %v1415, 0.0
    %v1449 = vld [vmem:[%s3] sm:$0xff]
    %v1450 = vld [vmem:[%s3 + $0x8] sm:$0xff]
    %v1451 = vld [vmem:[%s3 + $0x10] sm:$0xff]
    %v1452 = vld [vmem:[%s3 + $0x18] sm:$0xff]
    %v1453 = vld [vmem:[%s4] sm:$0xff]
    %v1454 = vld [vmem:[%s4 + $0x8] sm:$0xff]
    %v1455 = vld [vmem:[%s4 + $0x10] sm:$0xff]
    %v1456 = vld [vmem:[%s4 + $0x18] sm:$0xff]
    %1458 = vset.pattern.permute.xlu0 0
    %1459 = vperm.xlu0 %1458, %v1453
    %v1460 = vpop.permute.xlu0 %1459
    %1463 = vset.pattern.permute.xlu0 0
    %1464 = vperm.xlu0 %1463, %v1454
    %v1465 = vpop.permute.xlu0 %1464
    %1468 = vset.pattern.permute.xlu0 0
    %1469 = vperm.xlu0 %1468, %v1455
    %v1470 = vpop.permute.xlu0 %1469
    %1473 = vset.pattern.permute.xlu0 0
    %1474 = vperm.xlu0 %1473, %v1456
    %v1475 = vpop.permute.xlu0 %1474
    %v1478 = vsel %vm590, %v1449, 0
    %v1481 = vsel %vm590, %v1450, 0
    %v1484 = vsel %vm590, %v1451, 0
    %v1487 = vsel %vm590, %v1452, 0
    %1489 = vmatpush.msra.mxu0 0.0
    %1490 = vmatpush.msra.mxu0 0.0
    %1491 = vmatpush.msra.mxu0 0.0
    %1492 = vmatpush.msra.mxu0 0.0
    %1493 = vmatpush.msra.mxu0 0.0
    %1494 = vmatpush.msra.mxu0 0.0
    %1495 = vmatpush.msra.mxu0 0.0
    %1496 = vmatpush.msra.mxu0 0.0
    %1497 = vmatpush.msra.mxu0 %v1445
    %1498 = vmatpush.msra.mxu0 %v1441
    %1499 = vmatpush.msra.mxu0 %v1437
    %1500 = vmatpush.msra.mxu0 %v1433
    %1501 = vmatpush.msra.mxu0 %v1429
    %1502 = vmatpush.msra.mxu0 %v1425
    %1503 = vmatpush.msra.mxu0 %v1421
    %1504 = vmatpush.msra.mxu0 %v1417
    %1505 = vmatmul.f32.gmra.mxu0 %v1478
    %v1506 = vpop.f32.mrf.mxu0
    %v1507 = vadd.f32 %v1460, %v1506
    %1508 = vmatmul.f32.gmra.mxu0 %v1481
    %v1509 = vpop.f32.mrf.mxu0
    %v1510 = vadd.f32 %v1465, %v1509
    %1511 = vmatmul.f32.gmra.mxu0 %v1484
    %v1512 = vpop.f32.mrf.mxu0
    %v1513 = vadd.f32 %v1470, %v1512
    %1514 = vmatmul.f32.gmra.mxu0 %v1487
    %v1515 = vpop.f32.mrf.mxu0
    %v1516 = vadd.f32 %v1475, %v1515
    %1517 = vdwg.mxu0
    %1518 = vmatpush.msra.mxu0 0.0
    %1519 = vmatpush.msra.mxu0 0.0
    %1520 = vmatpush.msra.mxu0 0.0
    %1521 = vmatpush.msra.mxu0 0.0
    %1522 = vmatpush.msra.mxu0 0.0
    %1523 = vmatpush.msra.mxu0 0.0
    %1524 = vmatpush.msra.mxu0 0.0
    %1525 = vmatpush.msra.mxu0 0.0
    %1526 = vmatpush.msra.mxu0 %v1446
    %1527 = vmatpush.msra.mxu0 %v1442
    %1528 = vmatpush.msra.mxu0 %v1438
    %1529 = vmatpush.msra.mxu0 %v1434
    %1530 = vmatpush.msra.mxu0 %v1430
    %1531 = vmatpush.msra.mxu0 %v1426
    %1532 = vmatpush.msra.mxu0 %v1422
    %1533 = vmatpush.msra.mxu0 %v1418
    %1534 = vmatmul.f32.gmra.mxu0 %v1478
    %v1535 = vpop.f32.mrf.mxu0
    %v1536 = vadd.f32 %v1460, %v1535
    %1537 = vmatmul.f32.gmra.mxu0 %v1481
    %v1538 = vpop.f32.mrf.mxu0
    %v1539 = vadd.f32 %v1465, %v1538
    %1540 = vmatmul.f32.gmra.mxu0 %v1484
    %v1541 = vpop.f32.mrf.mxu0
    %v1542 = vadd.f32 %v1470, %v1541
    %1543 = vmatmul.f32.gmra.mxu0 %v1487
    %v1544 = vpop.f32.mrf.mxu0
    %v1545 = vadd.f32 %v1475, %v1544
    %1546 = vdwg.mxu0
    %1547 = vmatpush.msra.mxu0 0.0
    %1548 = vmatpush.msra.mxu0 0.0
    %1549 = vmatpush.msra.mxu0 0.0
    %1550 = vmatpush.msra.mxu0 0.0
    %1551 = vmatpush.msra.mxu0 0.0
    %1552 = vmatpush.msra.mxu0 0.0
    %1553 = vmatpush.msra.mxu0 0.0
    %1554 = vmatpush.msra.mxu0 0.0
    %1555 = vmatpush.msra.mxu0 %v1447
    %1556 = vmatpush.msra.mxu0 %v1443
    %1557 = vmatpush.msra.mxu0 %v1439
    %1558 = vmatpush.msra.mxu0 %v1435
    %1559 = vmatpush.msra.mxu0 %v1431
    %1560 = vmatpush.msra.mxu0 %v1427
    %1561 = vmatpush.msra.mxu0 %v1423
    %1562 = vmatpush.msra.mxu0 %v1419
    %1563 = vmatmul.f32.gmra.mxu0 %v1478
    %v1564 = vpop.f32.mrf.mxu0
    %v1565 = vadd.f32 %v1460, %v1564
    %1566 = vmatmul.f32.gmra.mxu0 %v1481
    %v1567 = vpop.f32.mrf.mxu0
    %v1568 = vadd.f32 %v1465, %v1567
    %1569 = vmatmul.f32.gmra.mxu0 %v1484
    %v1570 = vpop.f32.mrf.mxu0
    %v1571 = vadd.f32 %v1470, %v1570
    %1572 = vmatmul.f32.gmra.mxu0 %v1487
    %v1573 = vpop.f32.mrf.mxu0
    %v1574 = vadd.f32 %v1475, %v1573
    %1575 = vdwg.mxu0
    %1576 = vmatpush.msra.mxu0 0.0
    %1577 = vmatpush.msra.mxu0 0.0
    %1578 = vmatpush.msra.mxu0 0.0
    %1579 = vmatpush.msra.mxu0 0.0
    %1580 = vmatpush.msra.mxu0 0.0
    %1581 = vmatpush.msra.mxu0 0.0
    %1582 = vmatpush.msra.mxu0 0.0
    %1583 = vmatpush.msra.mxu0 0.0
    %1584 = vmatpush.msra.mxu0 %v1448
    %1585 = vmatpush.msra.mxu0 %v1444
    %1586 = vmatpush.msra.mxu0 %v1440
    %1587 = vmatpush.msra.mxu0 %v1436
    %1588 = vmatpush.msra.mxu0 %v1432
    %1589 = vmatpush.msra.mxu0 %v1428
    %1590 = vmatpush.msra.mxu0 %v1424
    %1591 = vmatpush.msra.mxu0 %v1420
    %1592 = vmatmul.f32.gmra.mxu0 %v1478
    %v1593 = vpop.f32.mrf.mxu0
    %v1594 = vadd.f32 %v1460, %v1593
    %1595 = vmatmul.f32.gmra.mxu0 %v1481
    %v1596 = vpop.f32.mrf.mxu0
    %v1597 = vadd.f32 %v1465, %v1596
    %1598 = vmatmul.f32.gmra.mxu0 %v1484
    %v1599 = vpop.f32.mrf.mxu0
    %v1600 = vadd.f32 %v1470, %v1599
    %1601 = vmatmul.f32.gmra.mxu0 %v1487
    %v1602 = vpop.f32.mrf.mxu0
    %v1603 = vadd.f32 %v1475, %v1602
    %1604 = vdwg.mxu0
    %v1605 = vmax.f32 %v1507, 0.0
    %v1606 = vmax.f32 %v1536, 0.0
    %v1607 = vmax.f32 %v1565, 0.0
    %v1608 = vmax.f32 %v1594, 0.0
    %v1609 = vmax.f32 %v1510, 0.0
    %v1610 = vmax.f32 %v1539, 0.0
    %v1611 = vmax.f32 %v1568, 0.0
    %v1612 = vmax.f32 %v1597, 0.0
    %v1613 = vmax.f32 %v1513, 0.0
    %v1614 = vmax.f32 %v1542, 0.0
    %v1615 = vmax.f32 %v1571, 0.0
    %v1616 = vmax.f32 %v1600, 0.0
    %v1617 = vmax.f32 %v1516, 0.0
    %v1618 = vmax.f32 %v1545, 0.0
    %v1619 = vmax.f32 %v1574, 0.0
    %v1620 = vmax.f32 %v1603, 0.0
    %v1621 = vld [vmem:[%s5] sm:$0xff]
    %v1622 = vld [vmem:[%s5 + $0x8] sm:$0xff]
    %v1623 = vld [vmem:[%s5 + $0x10] sm:$0xff]
    %v1624 = vld [vmem:[%s5 + $0x18] sm:$0xff]
    %v1625 = vld [vmem:[#allocation2] sm:$0x1]
    %1627 = vset.pattern.permute.xlu0 0
    %1628 = vperm.xlu0 %1627, %v1621
    %v1629 = vpop.permute.xlu0 %1628
    %1632 = vset.pattern.permute.xlu0 0
    %1633 = vperm.xlu0 %1632, %v1622
    %v1634 = vpop.permute.xlu0 %1633
    %1637 = vset.pattern.permute.xlu0 0
    %1638 = vperm.xlu0 %1637, %v1623
    %v1639 = vpop.permute.xlu0 %1638
    %1642 = vset.pattern.permute.xlu0 0
    %1643 = vperm.xlu0 %1642, %v1624
    %v1644 = vpop.permute.xlu0 %1643
    %v1646 = vmul.f32 %v1629, %v1605
    %v1647 = vmul.f32 %v1629, %v1606
    %v1648 = vmul.f32 %v1629, %v1607
    %v1649 = vmul.f32 %v1629, %v1608
    %v1650 = vmul.f32 %v1634, %v1609
    %v1651 = vmul.f32 %v1634, %v1610
    %v1652 = vmul.f32 %v1634, %v1611
    %v1653 = vmul.f32 %v1634, %v1612
    %v1654 = vmul.f32 %v1639, %v1613
    %v1655 = vmul.f32 %v1639, %v1614
    %v1656 = vmul.f32 %v1639, %v1615
    %v1657 = vmul.f32 %v1639, %v1616
    %v1658 = vmul.f32 %v1644, %v1617
    %v1659 = vmul.f32 %v1644, %v1618
    %v1660 = vmul.f32 %v1644, %v1619
    %v1661 = vmul.f32 %v1644, %v1620
    %v1662 = vadd.f32 %v1646, %v1650
    %v1663 = vadd.f32 %v1662, %v1654
    %v1664 = vadd.f32 %v1663, %v1658
    %v1665 = vrot.slane %v1664, 4
    %v1666 = vadd.f32 %v1664, %v1665
    %v1667 = vrot.slane %v1666, 2
    %v1668 = vadd.f32 %v1666, %v1667
    %v1669 = vrot.slane %v1668, 1
    %v1670 = vadd.f32 %v1668, %v1669
    %v1671 = vadd.f32 %v1647, %v1651
    %v1672 = vadd.f32 %v1671, %v1655
    %v1673 = vadd.f32 %v1672, %v1659
    %v1674 = vrot.slane %v1673, 4
    %v1675 = vadd.f32 %v1673, %v1674
    %v1676 = vrot.slane %v1675, 2
    %v1677 = vadd.f32 %v1675, %v1676
    %v1678 = vrot.slane %v1677, 1
    %v1679 = vadd.f32 %v1677, %v1678
    %v1680 = vadd.f32 %v1648, %v1652
    %v1681 = vadd.f32 %v1680, %v1656
    %v1682 = vadd.f32 %v1681, %v1660
    %v1683 = vrot.slane %v1682, 4
    %v1684 = vadd.f32 %v1682, %v1683
    %v1685 = vrot.slane %v1684, 2
    %v1686 = vadd.f32 %v1684, %v1685
    %v1687 = vrot.slane %v1686, 1
    %v1688 = vadd.f32 %v1686, %v1687
    %v1689 = vadd.f32 %v1649, %v1653
    %v1690 = vadd.f32 %v1689, %v1657
    %v1691 = vadd.f32 %v1690, %v1661
    %v1692 = vrot.slane %v1691, 4
    %v1693 = vadd.f32 %v1691, %v1692
    %v1694 = vrot.slane %v1693, 2
    %v1695 = vadd.f32 %v1693, %v1694
    %v1696 = vrot.slane %v1695, 1
    %v1697 = vadd.f32 %v1695, %v1696
    %1699 = vset.pattern.permute.xlu0 0
    %1700 = vperm.xlu0 %1699, %v1625
    %v1701 = vpop.permute.xlu0 %1700
    %v1703 = vperm.slane %v1701, 0
    %v1704 = vadd.f32 %v1670, %v1703
    %v1705 = vadd.f32 %v1679, %v1703
    %v1706 = vadd.f32 %v1688, %v1703
    %v1707 = vadd.f32 %v1697, %v1703
    %v1708 = vxor.u32 %v1704, 2147483648
    %v1709 = vxor.u32 %v1705, 2147483648
    %v1710 = vxor.u32 %v1706, 2147483648
    %v1711 = vxor.u32 %v1707, 2147483648
    %v1712 = vmul.f32 %v1708, 1.442695
    %v1713 = vpow.pop %v1712
    %v1714 = vmul.f32 %v1709, 1.442695
    %v1715 = vpow.pop %v1714
    %v1716 = vmul.f32 %v1710, 1.442695
    %v1717 = vpow.pop %v1716
    %v1718 = vmul.f32 %v1711, 1.442695
    %v1719 = vpow.pop %v1718
    %v1720 = vadd.f32 %v1713, 1.0
    %v1721 = vadd.f32 %v1715, 1.0
    %v1722 = vadd.f32 %v1717, 1.0
    %v1723 = vadd.f32 %v1719, 1.0
    %v1724 = vrcp.pop %v1720
    %v1725 = vmul.f32 %v1720, %v1724
    %v1726 = vsub.f32 1.0, %v1725
    %v1727 = vmul.f32 %v1724, %v1726
    %v1728 = vadd.f32 %v1724, %v1727
    %vm1729 = vweird.f32 %v1720
    %vm1730 = vweird.f32 %v1724
    %vm1731 = vmor %vm1729, %vm1730
    %v1732 = vsel %vm1731, %v1724, %v1728
    %v1733 = vand.u32 2147483647, %v1720
    %vm1734 = vcmp.eq.f32.partialorder %v1733, 8.507059e+37
    %v1735 = vand.u32 %v1720, 2147483648
    %v1736 = vor.u32 1.1754944e-38, %v1735
    %v1737 = vsel %vm1734, %v1736, %v1732
    %v1738 = vmul.f32 1.0, %v1737
    %v1739 = vrcp.pop %v1721
    %v1740 = vmul.f32 %v1721, %v1739
    %v1741 = vsub.f32 1.0, %v1740
    %v1742 = vmul.f32 %v1739, %v1741
    %v1743 = vadd.f32 %v1739, %v1742
    %vm1744 = vweird.f32 %v1721
    %vm1745 = vweird.f32 %v1739
    %vm1746 = vmor %vm1744, %vm1745
    %v1747 = vsel %vm1746, %v1739, %v1743
    %v1748 = vand.u32 2147483647, %v1721
    %vm1749 = vcmp.eq.f32.partialorder %v1748, 8.507059e+37
    %v1750 = vand.u32 %v1721, 2147483648
    %v1751 = vor.u32 1.1754944e-38, %v1750
    %v1752 = vsel %vm1749, %v1751, %v1747
    %v1753 = vmul.f32 1.0, %v1752
    %v1754 = vrcp.pop %v1722
    %v1755 = vmul.f32 %v1722, %v1754
    %v1756 = vsub.f32 1.0, %v1755
    %v1757 = vmul.f32 %v1754, %v1756
    %v1758 = vadd.f32 %v1754, %v1757
    %vm1759 = vweird.f32 %v1722
    %vm1760 = vweird.f32 %v1754
    %vm1761 = vmor %vm1759, %vm1760
    %v1762 = vsel %vm1761, %v1754, %v1758
    %v1763 = vand.u32 2147483647, %v1722
    %vm1764 = vcmp.eq.f32.partialorder %v1763, 8.507059e+37
    %v1765 = vand.u32 %v1722, 2147483648
    %v1766 = vor.u32 1.1754944e-38, %v1765
    %v1767 = vsel %vm1764, %v1766, %v1762
    %v1768 = vmul.f32 1.0, %v1767
    %v1769 = vrcp.pop %v1723
    %v1770 = vmul.f32 %v1723, %v1769
    %v1771 = vsub.f32 1.0, %v1770
    %v1772 = vmul.f32 %v1769, %v1771
    %v1773 = vadd.f32 %v1769, %v1772
    %vm1774 = vweird.f32 %v1723
    %vm1775 = vweird.f32 %v1769
    %vm1776 = vmor %vm1774, %vm1775
    %v1777 = vsel %vm1776, %v1769, %v1773
    %v1778 = vand.u32 2147483647, %v1723
    %vm1779 = vcmp.eq.f32.partialorder %v1778, 8.507059e+37
    %v1780 = vand.u32 %v1723, 2147483648
    %v1781 = vor.u32 1.1754944e-38, %v1780
    %v1782 = vsel %vm1779, %v1781, %v1777
    %v1783 = vmul.f32 1.0, %v1782
    %v1788 = vrot.slane %v1753, 7
    %v1789 = vrot.slane %v1768, 6
    %v1790 = vrot.slane %v1783, 5
    %v1791 = vsel %vm905, %v1738, %v1788
    %v1792 = vsel %vm907, %v1789, %v1790
    %v1793 = vsel %vm909, %v1791, %v1792
    %1795 = vst.msk [vmem:[#allocation3 + $0x4] sm:$0xf] %vm915, %v1793
    // Predicated region
    $region30: #{simple_network_forward.1} parent=1 // pred_check
      _
    $region31: #{simple_network_forward.1} parent=1 // pred_check_branch
      %1797 = sbr.rel (0) target = $region33
    $region32: #{simple_network_forward.1} parent=1 // pred_region
      %1799 = vsyncadd [#allocation4], 0
      %s1801 = sshll.u32 [#allocation3], 4
      %s1802 = int_to_ptr.vmem [resolvable:$true] %s1801
      %s1803 = sshll.u32 %s7, 4
      %s1804 = int_to_ptr.hbm [resolvable:$true] %s1803
      %1806 = dma.vmem_to_hbm [thread:$0]  %s1802, 128, %s1804, [#allocation4]
    $region33: #{simple_network_forward.1} parent=1 // pred_fallthru
      _
    // Predicated region
    $region34: #{simple_network_forward.1} parent=1 // pred_check
      _
    $region35: #{simple_network_forward.1} parent=1 // pred_check_branch
      %1808 = sbr.rel (0) target = $region37
    $region36: #{simple_network_forward.1} parent=1 // pred_region
      %1810 = dma.done [#allocation4], 128
    $region37: #{simple_network_forward.1} parent=1 // pred_fallthru
      _
    %1811 = vsyncpa [#allocation4], 1

</llo_original>
